<compile_context>
chip_gen: v7x
topology: tpu7x:2x2x1
jax: 0.10.0
libtpu: 0.0.40
codegen_flags: <defaults>
</compile_context>

<pallas_src>
import math
from functools import partial

import jax
import jax.numpy as jnp
from jax import lax
from jax.experimental import pallas as pl
from jax.experimental.pallas import tpu as pltpu

NEG_INF = -1.0e9
INV_E = float(1.0 / math.e)
_VPU_ADJ_MAX_T = 16          # below this, adjacency contractions stay on the VPU


def _round_up(v, m):
    return (v + m - 1) // m * m


def _gelu_exact(x):
    # torch.nn.GELU() default (erf form)
    return 0.5 * x * (1.0 + lax.erf(x * (1.0 / math.sqrt(2.0))))


def _quick_gelu(x):
    return x * jax.nn.sigmoid(1.702 * x)


def _softmax_last(x):
    m = jnp.max(x, axis=-1, keepdims=True)
    e = jnp.exp(x - m)
    return e * pl.reciprocal(jnp.sum(e, axis=-1, keepdims=True), approx=True)


def _temporal_encoder_kernel(
    lens_ref,                            # (B,) int32 in SMEM (scalar prefetch)
    x_ref,                               # (Bblk, Tp, Dp) compute dtype
    dist_ref,                            # (Tp, Tp) f32 exp(-|i-j|/e) table (batch-invariant)
    w1_ref, b1_ref,                      # (Dp, Hp), (1, Hp)
    wc_ref, bc_ref,                      # (Hp, 3*Hp) lane-packed taps [t-1|t|t+1], (1, Hp)
    w2_ref, b2_ref,                      # (Hp, Dp), (1, Dp)
    wg13_ref,                            # (Dp, 2*Dp)  [wg1 | wg3]
    wg2_ref, wg4_ref,                    # (Dp, Dp) each
    wout_ref, bl_ref,                    # (2*Dp, Dp) [wla ; wlb], (1, Dp)
    out_ref,                             # (Bblk, Tp, Dp) f32
    *, t_valid,
):
    Bblk, Tp, Dp = x_ref.shape
    Hp = w1_ref.shape[1]
    N = Bblk * Tp
    cd = w1_ref.dtype                    # matmul input dtype (bf16/f32); accumulation is f32

    # Per-row time index within its own sequence (conv boundary masks).
    t_in_seq = lax.broadcasted_iota(jnp.int32, (Bblk, Tp, 1), 1).reshape(N, 1)

    # ------------------- Local_Block -------------------
    x = x_ref[...].reshape(N, Dp).astype(cd)
    h = jnp.dot(x, w1_ref[...], preferred_element_type=jnp.float32) + b1_ref[...]
    if t_valid < Tp:
        # Time-padded rows would otherwise equal the bias; zero them so the conv's
        # zero padding at t = t_valid stays exact.
        h = jnp.where(t_in_seq < t_valid, h, 0.0)

    # All three conv taps in one matmul; p0/p1/p2 are 128-lane-aligned slices.
    p = jnp.dot(h.astype(cd), wc_ref[...], preferred_element_type=jnp.float32)
    p0, p1, p2 = p[:, :Hp], p[:, Hp:2 * Hp], p[:, 2 * Hp:]

    # conv[t] = p0[t-1] + p1[t] + p2[t+1] with zero padding at sequence boundaries.
    # Masked sublane shift (~16 KB/step; boundary + cross-sample rows zeroed).
    zrow = jnp.zeros((1, Hp), jnp.float32)
    prev = jnp.concatenate([zrow, p0[:-1, :]], axis=0)       # prev[t] = p0[t-1]
    nxt = jnp.concatenate([p2[1:, :], zrow], axis=0)         # nxt[t]  = p2[t+1]
    prev = jnp.where(t_in_seq > 0, prev, 0.0)
    nxt = jnp.where(t_in_seq < Tp - 1, nxt, 0.0)
    conv = prev + p1 + nxt + bc_ref[...]

    a = _gelu_exact(conv)                                    # nn.GELU(); Dropout(p=0) == id
    y = jnp.dot(a.astype(cd), w2_ref[...], preferred_element_type=jnp.float32) + b2_ref[...]
    y3 = y.reshape(Bblk, Tp, Dp)

    # ------------------- Global_Block -------------------
    # Validity mask rebuilt from the scalar-prefetched lengths (VPU iota + compare).
    base = pl.program_id(0) * Bblk
    row_id = lax.broadcasted_iota(jnp.int32, (1, Tp, Tp), 1)
    col_id = lax.broadcasted_iota(jnp.int32, (1, Tp, Tp), 2)
    pieces = []
    for b in range(Bblk):
        lb = lens_ref[base + b]
        pieces.append(jnp.where(jnp.logical_and(row_id < lb, col_id < lb), 1.0, 0.0))
    valid = pieces[0] if Bblk == 1 else jnp.concatenate(pieces, axis=0)   # (Bblk,Tp,Tp) f32

    # get_sim_adj: cosine similarity, threshold 0.7, mask invalid, softmax(-1). Kept f32.
    ssq = jnp.sum(y3 * y3, axis=-1, keepdims=True)
    yn = y3 * lax.rsqrt(jnp.maximum(ssq, 1e-16))
    sim = jnp.einsum("btd,bsd->bts", yn, yn, preferred_element_type=jnp.float32)
    sim = jnp.where(sim > 0.7, sim, 0.0)
    sim_adj = _softmax_last(jnp.where(valid > 0.0, sim, NEG_INF))

    # get_distance_adj: exp table hoisted to XLA; only mask + softmax per batch element.
    dis_adj = _softmax_last(jnp.where(valid > 0.0, dist_ref[...][None, :, :], NEG_INF))

    def adj_apply(adj, v3):
        # (Bblk,Tp,Tp) @ (Bblk,Tp,Dp) -> (Bblk,Tp,Dp).
        if Tp <= _VPU_ADJ_MAX_T:
            # Tiny batched matmuls (<4% MXU fill): unrolled broadcast-FMA on the VPU,
            # keeping the MXU free for the dense lane-wide matmuls.  f32 (v5e VPU safe).
            acc = adj[:, :, 0:1] * v3[:, 0:1, :]
            for s in range(1, Tp):
                acc = acc + adj[:, :, s:s + 1] * v3[:, s:s + 1, :]
            return acc
        return jnp.einsum("bts,bsd->btd", adj.astype(cd), v3.astype(cd),
                          preferred_element_type=jnp.float32)

    def dense(v3, w_ref):
        return jnp.dot(v3.reshape(N, Dp).astype(cd), w_ref[...],
                       preferred_element_type=jnp.float32).reshape(Bblk, Tp, Dp)

    # gcn1 / gcn3 share y as LHS -> one fused (Dp, 2*Dp) matmul (K=128, Nout=256).
    s13 = jnp.dot(y.astype(cd), wg13_ref[...], preferred_element_type=jnp.float32)
    s1 = s13[:, :Dp].reshape(Bblk, Tp, Dp)
    s3 = s13[:, Dp:].reshape(Bblk, Tp, Dp)

    # GraphConvolution(residual=True): adj @ (v @ W) + v
    x1h = _quick_gelu(adj_apply(sim_adj, s1) + y3)
    x2h = _quick_gelu(adj_apply(dis_adj, s3) + y3)
    x1 = _quick_gelu(adj_apply(sim_adj, dense(x1h, wg2_ref)) + x1h)
    x2 = _quick_gelu(adj_apply(dis_adj, dense(x2h, wg4_ref)) + x2h)

    # nn.Linear(2*out_dim, in_dim): lane-concat x1||x2 (128-aligned) -> one K=2*Dp matmul.
    x12 = jnp.concatenate([x1.reshape(N, Dp), x2.reshape(N, Dp)], axis=1).astype(cd)
    out = jnp.dot(x12, wout_ref[...], preferred_element_type=jnp.float32) + bl_ref[...]
    out_ref[...] = out.reshape(Bblk, Tp, Dp).astype(out_ref.dtype)


def _pad_to(a, shape):
    return jnp.pad(a, [(0, s - d) for d, s in zip(a.shape, shape)])


def temporal_encoder_pallas(x, mask, params, *, compute_dtype=jnp.bfloat16, block_b=None):
    B, T, D = x.shape
    H = params["w1"].shape[1]
    Dp, Hp, Tp = _round_up(D, 128), _round_up(H, 128), _round_up(T, 8)
    f32 = jnp.float32
    cd = compute_dtype

    if block_b is None:
        # Prefer >= 4 grid steps (2 per TC on v7x megacore), then >= 2 (DMA/compute
        # overlap everywhere), while keeping M = block_b*Tp <= ~256 to fill the MXU.
        divisors = [d for d in range(1, B + 1) if B % d == 0]
        cap = max(1, 256 // Tp)
        block_b = 1
        for min_grid in (4, 2, 1):
            cands = [d for d in divisors if d <= cap and B // d >= min_grid]
            if cands:
                block_b = max(cands)
                break
    assert B % block_b == 0
    grid = (B // block_b,)

    # Per-sample valid lengths -> SMEM via scalar prefetch (replaces mrow/mcol tensors).
    lens = jnp.sum((mask != 0).astype(jnp.int32), axis=1)                  # (B,) int32

    # Lane/time padded activations, passed in the compute dtype (halves the x DMA in bf16).
    x_p = _pad_to(x, (B, Tp, Dp)).astype(cd)

    # Batch-invariant distance table (hoisted to XLA).
    tids = jnp.arange(Tp, dtype=jnp.int32)
    dist = jnp.exp(-jnp.abs(tids[:, None] - tids[None, :]).astype(f32) * INV_E)

    # Zero-padded, lane-packed weights (compute dtype); biases stay f32 (post-acc adds).
    w1 = _pad_to(params["w1"], (Dp, Hp)).astype(cd)
    b1 = _pad_to(params["b1"], (1, Hp)).astype(f32)
    wc = jnp.concatenate([_pad_to(params["wc"][k], (Hp, Hp)) for k in range(3)],
                         axis=1).astype(cd)                                # (Hp, 3*Hp)
    bc = _pad_to(params["bc"], (1, Hp)).astype(f32)
    w2 = _pad_to(params["w2"], (Hp, Dp)).astype(cd)
    b2 = _pad_to(params["b2"], (1, Dp)).astype(f32)
    wg13 = jnp.concatenate([_pad_to(params["wg1"], (Dp, Dp)),
                            _pad_to(params["wg3"], (Dp, Dp))], axis=1).astype(cd)
    wg2 = _pad_to(params["wg2"], (Dp, Dp)).astype(cd)
    wg4 = _pad_to(params["wg4"], (Dp, Dp)).astype(cd)
    wout = jnp.concatenate([_pad_to(params["wla"], (Dp, Dp)),
                            _pad_to(params["wlb"], (Dp, Dp))], axis=0).astype(cd)
    bl = _pad_to(params["bl"], (1, Dp)).astype(f32)

    # NOTE: weight blocks are grid-invariant, so Pallas skips their re-DMA across steps;
    # pl.Buffered(1) would only trim ~0.4 MB of resident VMEM at these shapes.
    def fixed(shape):
        nd = len(shape)
        return pl.BlockSpec(shape, lambda i, lens_ref, _nd=nd: (0,) * _nd)

    def per_batch(shape):
        return pl.BlockSpec(shape, lambda i, lens_ref: (i, 0, 0))

    grid_spec = pltpu.PrefetchScalarGridSpec(
        num_scalar_prefetch=1,
        grid=grid,
        in_specs=[
            per_batch((block_b, Tp, Dp)),            # x
            fixed((Tp, Tp)),                         # distance table
            fixed((Dp, Hp)), fixed((1, Hp)),         # linear1
            fixed((Hp, 3 * Hp)), fixed((1, Hp)),     # conv taps (lane-packed) + bias
            fixed((Hp, Dp)), fixed((1, Dp)),         # linear2
            fixed((Dp, 2 * Dp)),                     # [wg1 | wg3]
            fixed((Dp, Dp)), fixed((Dp, Dp)),        # wg2, wg4
            fixed((2 * Dp, Dp)), fixed((1, Dp)),     # final linear (stacked) + bias
        ],
        out_specs=per_batch((block_b, Tp, Dp)),
    )

    out = pl.pallas_call(
        partial(_temporal_encoder_kernel, t_valid=T),
        out_shape=jax.ShapeDtypeStruct((B, Tp, Dp), f32),
        grid_spec=grid_spec,
        compiler_params=pltpu.CompilerParams(
            dimension_semantics=("parallel",),
            vmem_limit_bytes=32 * 1024 * 1024,       # explicit; valid on v7x's 64 MiB VMEM
        ),
    )(lens, x_p, dist, w1, b1, wc, bc, w2, b2, wg13, wg2, wg4, wout, bl)

    return out[:, :T, :D]


def init_params(key, in_dim, hidden_dim, out_dim):
    # Global_Block requires in_dim == out_dim (identity residual, gcn2 consumes gcn1 output)
    assert in_dim == out_dim
    ks = jax.random.split(key, 12)

    def w(k, shape, scale=0.05):
        return scale * jax.random.normal(k, shape, dtype=jnp.float32)

    conv_w = w(ks[2], (hidden_dim, hidden_dim, 3))   # torch Conv1d layout (out, in, k)
    wl = w(ks[10], (2 * out_dim, in_dim))            # nn.Linear(2*out_dim, in_dim)
    return {
        "w1": w(ks[0], (in_dim, hidden_dim)),
        "b1": w(ks[1], (1, hidden_dim)),
        "wc": jnp.stack([conv_w[:, :, k].T for k in range(3)], axis=0),  # (3, in, out)
        "bc": w(ks[3], (1, hidden_dim)),
        "w2": w(ks[4], (hidden_dim, out_dim)),
        "b2": w(ks[5], (1, out_dim)),
        "wg1": w(ks[6], (out_dim, out_dim)),
        "wg2": w(ks[7], (out_dim, out_dim)),
        "wg3": w(ks[8], (out_dim, out_dim)),
        "wg4": w(ks[9], (out_dim, out_dim)),
        "wla": wl[:out_dim],
        "wlb": wl[out_dim:],
        "bl": w(ks[11], (1, in_dim)),
    }


def temporal_encoder_reference(x, mask, p):
    # Pure-JAX reference mirroring the PyTorch forward semantics.
    B, T, D = x.shape
    L = jnp.sum((mask != 0).astype(jnp.int32), axis=1)
    h = jnp.einsum("btd,dh->bth", x, p["w1"]) + p["b1"]
    hp = jnp.pad(h, ((0, 0), (1, 0), (0, 0)))[:, :T]
    hn = jnp.pad(h, ((0, 0), (0, 1), (0, 0)))[:, 1:]
    conv = (jnp.einsum("bth,hg->btg", hp, p["wc"][0])
            + jnp.einsum("bth,hg->btg", h, p["wc"][1])
            + jnp.einsum("bth,hg->btg", hn, p["wc"][2]) + p["bc"])
    a = 0.5 * conv * (1.0 + lax.erf(conv / jnp.sqrt(2.0)))
    y = jnp.einsum("bth,hd->btd", a, p["w2"]) + p["b2"]

    ti = jnp.arange(T)[:, None]
    tj = jnp.arange(T)[None, :]
    valid = (ti[None] < L[:, None, None]) & (tj[None] < L[:, None, None])
    yn = y / jnp.maximum(jnp.linalg.norm(y, axis=-1, keepdims=True), 1e-8)
    sim = jnp.einsum("btd,bsd->bts", yn, yn)
    sim = jnp.where(sim > 0.7, sim, 0.0)
    sim_adj = jax.nn.softmax(jnp.where(valid, sim, NEG_INF), axis=-1)
    dist = jnp.exp(-jnp.abs(ti - tj).astype(jnp.float32) / math.e)
    dis_adj = jax.nn.softmax(jnp.where(valid, dist[None], NEG_INF), axis=-1)

    qg = lambda v: v * jax.nn.sigmoid(1.702 * v)
    gcn = lambda v, adj, w: jnp.einsum("bts,bsd->btd", adj,
                                       jnp.einsum("btd,de->bte", v, w)) + v
    x1 = qg(gcn(qg(gcn(y, sim_adj, p["wg1"])), sim_adj, p["wg2"]))
    x2 = qg(gcn(qg(gcn(y, dis_adj, p["wg3"])), dis_adj, p["wg4"]))
    return (jnp.einsum("btd,de->bte", x1, p["wla"])
            + jnp.einsum("btd,de->bte", x2, p["wlb"]) + p["bl"])


if __name__ == "__main__":
    B, T = 2, 8
    in_dim, hidden_dim, out_dim = 32, 48, 32

    key = jax.random.PRNGKey(0)
    kx, kp = jax.random.split(key)
    x = jax.random.normal(kx, (B, T, in_dim), dtype=jnp.float32)
    lens = jnp.array([T, 5], dtype=jnp.int32)                # second sequence is padded
    mask = (jnp.arange(T)[None, :] < lens[:, None]).astype(jnp.float32)
    params = init_params(kp, in_dim, hidden_dim, out_dim)

    ref = temporal_encoder_reference(x, mask, params)

    # f32 matmul path: tight numerical validation.
    out_f32 = jax.block_until_ready(
        temporal_encoder_pallas(x, mask, params, compute_dtype=jnp.float32))
    assert out_f32.shape == (B, T, in_dim)
    err_f32 = float(jnp.max(jnp.abs(out_f32 - ref)))
    assert jnp.allclose(out_f32, ref, rtol=5e-2, atol=5e-2), err_f32

    # Default bf16 matmul path (MXU-native on v5e/v6e/v7x): looser tolerance.
    out_bf16 = jax.block_until_ready(temporal_encoder_pallas(x, mask, params))
    assert out_bf16.shape == (B, T, in_dim)
    err_bf16 = float(jnp.max(jnp.abs(out_bf16 - ref)))
    assert jnp.allclose(out_bf16, ref, rtol=1e-1, atol=1e-1), err_bf16

    print("KERNEL_OK")
</pallas_src>

<mosaic_0001>
module attributes {stable_mosaic.version = 11 : i64} {
  func.func @_temporal_encoder_kernel(%arg0: i32, %arg1: memref<2xi32, #tpu.memory_space<smem>>, %arg2: memref<1x8x128xf32, #tpu.memory_space<vmem>>, %arg3: memref<8x8xf32, #tpu.memory_space<vmem>>, %arg4: memref<128x128xf32, #tpu.memory_space<vmem>>, %arg5: memref<1x128xf32, #tpu.memory_space<vmem>>, %arg6: memref<128x384xf32, #tpu.memory_space<vmem>>, %arg7: memref<1x128xf32, #tpu.memory_space<vmem>>, %arg8: memref<128x128xf32, #tpu.memory_space<vmem>>, %arg9: memref<1x128xf32, #tpu.memory_space<vmem>>, %arg10: memref<128x256xf32, #tpu.memory_space<vmem>>, %arg11: memref<128x128xf32, #tpu.memory_space<vmem>>, %arg12: memref<128x128xf32, #tpu.memory_space<vmem>>, %arg13: memref<256x128xf32, #tpu.memory_space<vmem>>, %arg14: memref<1x128xf32, #tpu.memory_space<vmem>>, %arg15: memref<1x8x128xf32, #tpu.memory_space<vmem>>) attributes {dimension_semantics = [#tpu.dimension_semantics<parallel>], iteration_bounds = array<i64: 2>, scalar_prefetch = 1 : i64, scratch_operands = 0 : i64, tpu.core_type = #tpu.core_type<tc>, window_params = [{transform_indices = @transform_0, window_bounds = array<i64: 1, 8, 128>}, {pipeline_mode = #tpu.pipeline_mode<synchronous>, transform_indices = @transform_1, window_bounds = array<i64: 8, 8>}, {pipeline_mode = #tpu.pipeline_mode<synchronous>, transform_indices = @transform_2, window_bounds = array<i64: 128, 128>}, {pipeline_mode = #tpu.pipeline_mode<synchronous>, transform_indices = @transform_3, window_bounds = array<i64: 1, 128>}, {pipeline_mode = #tpu.pipeline_mode<synchronous>, transform_indices = @transform_4, window_bounds = array<i64: 128, 384>}, {pipeline_mode = #tpu.pipeline_mode<synchronous>, transform_indices = @transform_5, window_bounds = array<i64: 1, 128>}, {pipeline_mode = #tpu.pipeline_mode<synchronous>, transform_indices = @transform_6, window_bounds = array<i64: 128, 128>}, {pipeline_mode = #tpu.pipeline_mode<synchronous>, transform_indices = @transform_7, window_bounds = array<i64: 1, 128>}, {pipeline_mode = #tpu.pipeline_mode<synchronous>, transform_indices = @transform_8, window_bounds = array<i64: 128, 256>}, {pipeline_mode = #tpu.pipeline_mode<synchronous>, transform_indices = @transform_9, window_bounds = array<i64: 128, 128>}, {pipeline_mode = #tpu.pipeline_mode<synchronous>, transform_indices = @transform_10, window_bounds = array<i64: 128, 128>}, {pipeline_mode = #tpu.pipeline_mode<synchronous>, transform_indices = @transform_11, window_bounds = array<i64: 256, 128>}, {pipeline_mode = #tpu.pipeline_mode<synchronous>, transform_indices = @transform_12, window_bounds = array<i64: 1, 128>}, {transform_indices = @transform_13, window_bounds = array<i64: 1, 8, 128>}]} {
    %0 = tpu.iota {dimensions = array<i32: 1>} : vector<1x8x1xi32>
    %1 = vector.shape_cast %0 : vector<1x8x1xi32> to vector<8x1xi32>
    %c0 = arith.constant 0 : index
    %c0_0 = arith.constant 0 : index
    %c0_1 = arith.constant 0 : index
    %2 = vector.load %arg2[%c0, %c0_0, %c0_1] : memref<1x8x128xf32, #tpu.memory_space<vmem>>, vector<1x8x128xf32>
    %3 = vector.shape_cast %2 : vector<1x8x128xf32> to vector<8x128xf32>
    %c0_2 = arith.constant 0 : index
    %c0_3 = arith.constant 0 : index
    %4 = vector.load %arg4[%c0_2, %c0_3] : memref<128x128xf32, #tpu.memory_space<vmem>>, vector<128x128xf32>
    %cst = arith.constant dense<0.000000e+00> : vector<8x128xf32>
    %5 = tpu.matmul %3, %4, %cst {dimension_numbers = #tpu.dot_dimension_numbers<[1], [0], [0], [1], [0, 0, 1, 1], [], []>} : vector<8x128xf32>, vector<128x128xf32>, vector<8x128xf32> -> vector<8x128xf32>
    %c0_4 = arith.constant 0 : index
    %c0_5 = arith.constant 0 : index
    %6 = vector.load %arg5[%c0_4, %c0_5] : memref<1x128xf32, #tpu.memory_space<vmem>>, vector<1x128xf32>
    %7 = vector.broadcast %6 : vector<1x128xf32> to vector<8x128xf32>
    %8 = arith.addf %5, %7 : vector<8x128xf32>
    %c0_6 = arith.constant 0 : index
    %c0_7 = arith.constant 0 : index
    %9 = vector.load %arg6[%c0_6, %c0_7] : memref<128x384xf32, #tpu.memory_space<vmem>>, vector<128x384xf32>
    %cst_8 = arith.constant dense<0.000000e+00> : vector<8x384xf32>
    %10 = tpu.matmul %8, %9, %cst_8 {dimension_numbers = #tpu.dot_dimension_numbers<[1], [0], [0], [1], [0, 0, 1, 1], [], []>} : vector<8x128xf32>, vector<128x384xf32>, vector<8x384xf32> -> vector<8x384xf32>
    %11 = vector.extract_strided_slice %10 {offsets = [0, 0], sizes = [8, 128], strides = [1, 1]} : vector<8x384xf32> to vector<8x128xf32>
    %12 = vector.extract_strided_slice %10 {offsets = [0, 128], sizes = [8, 128], strides = [1, 1]} : vector<8x384xf32> to vector<8x128xf32>
    %13 = vector.extract_strided_slice %10 {offsets = [0, 256], sizes = [8, 128], strides = [1, 1]} : vector<8x384xf32> to vector<8x128xf32>
    %cst_9 = arith.constant 0.000000e+00 : f32
    %14 = vector.broadcast %cst_9 : f32 to vector<1x128xf32>
    %15 = vector.extract_strided_slice %11 {offsets = [0, 0], sizes = [7, 128], strides = [1, 1]} : vector<8x128xf32> to vector<7x128xf32>
    %16 = tpu.concatenate %14, %15 in 0 : vector<1x128xf32>, vector<7x128xf32> -> vector<8x128xf32>
    %17 = vector.extract_strided_slice %13 {offsets = [1, 0], sizes = [7, 128], strides = [1, 1]} : vector<8x128xf32> to vector<7x128xf32>
    %18 = tpu.concatenate %17, %14 in 0 : vector<7x128xf32>, vector<1x128xf32> -> vector<8x128xf32>
    %c0_i32 = arith.constant 0 : i32
    %19 = vector.broadcast %c0_i32 : i32 to vector<8x1xi32>
    %20 = arith.cmpi sgt, %1, %19 : vector<8x1xi32>
    %cst_10 = arith.constant 0.000000e+00 : f32
    %21 = vector.shape_cast %20 : vector<8x1xi1> to vector<8x1xi1>
    %22 = vector.broadcast %21 : vector<8x1xi1> to vector<8x128xi1>
    %23 = vector.broadcast %cst_10 : f32 to vector<8x128xf32>
    %24 = arith.select %22, %16, %23 : vector<8x128xi1>, vector<8x128xf32>
    %c7_i32 = arith.constant 7 : i32
    %25 = vector.broadcast %c7_i32 : i32 to vector<8x1xi32>
    %26 = arith.cmpi slt, %1, %25 : vector<8x1xi32>
    %cst_11 = arith.constant 0.000000e+00 : f32
    %27 = vector.shape_cast %26 : vector<8x1xi1> to vector<8x1xi1>
    %28 = vector.broadcast %27 : vector<8x1xi1> to vector<8x128xi1>
    %29 = vector.broadcast %cst_11 : f32 to vector<8x128xf32>
    %30 = arith.select %28, %18, %29 : vector<8x128xi1>, vector<8x128xf32>
    %31 = arith.addf %24, %12 : vector<8x128xf32>
    %32 = arith.addf %31, %30 : vector<8x128xf32>
    %c0_12 = arith.constant 0 : index
    %c0_13 = arith.constant 0 : index
    %33 = vector.load %arg7[%c0_12, %c0_13] : memref<1x128xf32, #tpu.memory_space<vmem>>, vector<1x128xf32>
    %34 = vector.broadcast %33 : vector<1x128xf32> to vector<8x128xf32>
    %35 = arith.addf %32, %34 : vector<8x128xf32>
    %cst_14 = arith.constant 5.000000e-01 : f32
    %36 = vector.broadcast %cst_14 : f32 to vector<8x128xf32>
    %37 = arith.mulf %36, %35 : vector<8x128xf32>
    %cst_15 = arith.constant 0.707106769 : f32
    %38 = vector.broadcast %cst_15 : f32 to vector<8x128xf32>
    %39 = arith.mulf %35, %38 : vector<8x128xf32>
    %40 = math.erf %39 : vector<8x128xf32>
    %cst_16 = arith.constant 1.000000e+00 : f32
    %41 = vector.broadcast %cst_16 : f32 to vector<8x128xf32>
    %42 = arith.addf %41, %40 : vector<8x128xf32>
    %43 = arith.mulf %37, %42 : vector<8x128xf32>
    %c0_17 = arith.constant 0 : index
    %c0_18 = arith.constant 0 : index
    %44 = vector.load %arg8[%c0_17, %c0_18] : memref<128x128xf32, #tpu.memory_space<vmem>>, vector<128x128xf32>
    %cst_19 = arith.constant dense<0.000000e+00> : vector<8x128xf32>
    %45 = tpu.matmul %43, %44, %cst_19 {dimension_numbers = #tpu.dot_dimension_numbers<[1], [0], [0], [1], [0, 0, 1, 1], [], []>} : vector<8x128xf32>, vector<128x128xf32>, vector<8x128xf32> -> vector<8x128xf32>
    %c0_20 = arith.constant 0 : index
    %c0_21 = arith.constant 0 : index
    %46 = vector.load %arg9[%c0_20, %c0_21] : memref<1x128xf32, #tpu.memory_space<vmem>>, vector<1x128xf32>
    %47 = vector.broadcast %46 : vector<1x128xf32> to vector<8x128xf32>
    %48 = arith.addf %45, %47 : vector<8x128xf32>
    %49 = vector.shape_cast %48 : vector<8x128xf32> to vector<1x8x128xf32>
    %c1_i32 = arith.constant 1 : i32
    %50 = arith.muli %arg0, %c1_i32 : i32
    %51 = tpu.iota {dimensions = array<i32: 1>} : vector<1x8x8xi32>
    %52 = tpu.iota {dimensions = array<i32: 2>} : vector<1x8x8xi32>
    %c0_i32_22 = arith.constant 0 : i32
    %53 = arith.addi %50, %c0_i32_22 : i32
    %54 = arith.index_cast %53 : i32 to index
    %55 = memref.load %arg1[%54] : memref<2xi32, #tpu.memory_space<smem>>
    %56 = vector.broadcast %55 : i32 to vector<1x8x8xi32>
    %57 = arith.cmpi slt, %51, %56 : vector<1x8x8xi32>
    %58 = vector.broadcast %55 : i32 to vector<1x8x8xi32>
    %59 = arith.cmpi slt, %52, %58 : vector<1x8x8xi32>
    %60 = arith.andi %57, %59 : vector<1x8x8xi1>
    %cst_23 = arith.constant 1.000000e+00 : f32
    %cst_24 = arith.constant 0.000000e+00 : f32
    %61 = vector.broadcast %cst_23 : f32 to vector<1x8x8xf32>
    %62 = vector.broadcast %cst_24 : f32 to vector<1x8x8xf32>
    %63 = arith.select %60, %61, %62 : vector<1x8x8xi1>, vector<1x8x8xf32>
    %64 = arith.mulf %49, %49 : vector<1x8x128xf32>
    %cst_25 = arith.constant dense<0.000000e+00> : vector<1x8xf32>
    %65 = vector.multi_reduction <add>, %64, %cst_25 [2] : vector<1x8x128xf32> to vector<1x8xf32>
    %66 = vector.shape_cast %65 : vector<1x8xf32> to vector<1x8x1xf32>
    %cst_26 = arith.constant 1.000000e-16 : f32
    %67 = vector.broadcast %cst_26 : f32 to vector<1x8x1xf32>
    %68 = arith.maximumf %66, %67 : vector<1x8x1xf32>
    %69 = math.rsqrt %68 : vector<1x8x1xf32>
    %70 = vector.broadcast %69 : vector<1x8x1xf32> to vector<1x8x128xf32>
    %71 = arith.mulf %49, %70 : vector<1x8x128xf32>
    "tpu.trace_start"() <{level = 10 : i32, message = "btd,bsd->bts"}> : () -> ()
    %cst_27 = arith.constant dense<0.000000e+00> : vector<1x8x8xf32>
    %72 = tpu.matmul %71, %71, %cst_27 {dimension_numbers = #tpu.dot_dimension_numbers<[2], [2], [1], [1], [0, 0, 0, 1, 1, 1], [0], [0]>} : vector<1x8x128xf32>, vector<1x8x128xf32>, vector<1x8x8xf32> -> vector<1x8x8xf32>
    %cst_28 = arith.constant 0.699999988 : f32
    "tpu.trace_stop"() : () -> ()
    %73 = vector.broadcast %cst_28 : f32 to vector<1x8x8xf32>
    %74 = arith.cmpf ogt, %72, %73 : vector<1x8x8xf32>
    %cst_29 = arith.constant 0.000000e+00 : f32
    %75 = vector.broadcast %cst_29 : f32 to vector<1x8x8xf32>
    %76 = arith.select %74, %72, %75 : vector<1x8x8xi1>, vector<1x8x8xf32>
    %cst_30 = arith.constant 0.000000e+00 : f32
    %77 = vector.broadcast %cst_30 : f32 to vector<1x8x8xf32>
    %78 = arith.cmpf ogt, %63, %77 : vector<1x8x8xf32>
    %cst_31 = arith.constant -1.000000e+09 : f32
    %79 = vector.broadcast %cst_31 : f32 to vector<1x8x8xf32>
    %80 = arith.select %78, %76, %79 : vector<1x8x8xi1>, vector<1x8x8xf32>
    %cst_32 = arith.constant dense<0xFF800000> : vector<1x8xf32>
    %81 = vector.multi_reduction <maximumf>, %80, %cst_32 [2] : vector<1x8x8xf32> to vector<1x8xf32>
    %82 = vector.shape_cast %81 : vector<1x8xf32> to vector<1x8x1xf32>
    %83 = vector.broadcast %82 : vector<1x8x1xf32> to vector<1x8x8xf32>
    %84 = arith.subf %80, %83 : vector<1x8x8xf32>
    %85 = math.exp %84 : vector<1x8x8xf32>
    %cst_33 = arith.constant dense<0.000000e+00> : vector<1x8xf32>
    %86 = vector.multi_reduction <add>, %85, %cst_33 [2] : vector<1x8x8xf32> to vector<1x8xf32>
    %87 = vector.shape_cast %86 : vector<1x8xf32> to vector<1x8x1xf32>
    %88 = tpu.reciprocal %87 {approx = true} : vector<1x8x1xf32> -> vector<1x8x1xf32>
    %89 = vector.broadcast %88 : vector<1x8x1xf32> to vector<1x8x8xf32>
    %90 = arith.mulf %85, %89 : vector<1x8x8xf32>
    %cst_34 = arith.constant 0.000000e+00 : f32
    %91 = vector.broadcast %cst_34 : f32 to vector<1x8x8xf32>
    %92 = arith.cmpf ogt, %63, %91 : vector<1x8x8xf32>
    %c0_35 = arith.constant 0 : index
    %c0_36 = arith.constant 0 : index
    %93 = vector.load %arg3[%c0_35, %c0_36] : memref<8x8xf32, #tpu.memory_space<vmem>>, vector<8x8xf32>
    %94 = vector.shape_cast %93 : vector<8x8xf32> to vector<1x8x8xf32>
    %cst_37 = arith.constant -1.000000e+09 : f32
    %95 = vector.broadcast %cst_37 : f32 to vector<1x8x8xf32>
    %96 = arith.select %92, %94, %95 : vector<1x8x8xi1>, vector<1x8x8xf32>
    %cst_38 = arith.constant dense<0xFF800000> : vector<1x8xf32>
    %97 = vector.multi_reduction <maximumf>, %96, %cst_38 [2] : vector<1x8x8xf32> to vector<1x8xf32>
    %98 = vector.shape_cast %97 : vector<1x8xf32> to vector<1x8x1xf32>
    %99 = vector.broadcast %98 : vector<1x8x1xf32> to vector<1x8x8xf32>
    %100 = arith.subf %96, %99 : vector<1x8x8xf32>
    %101 = math.exp %100 : vector<1x8x8xf32>
    %cst_39 = arith.constant dense<0.000000e+00> : vector<1x8xf32>
    %102 = vector.multi_reduction <add>, %101, %cst_39 [2] : vector<1x8x8xf32> to vector<1x8xf32>
    %103 = vector.shape_cast %102 : vector<1x8xf32> to vector<1x8x1xf32>
    %104 = tpu.reciprocal %103 {approx = true} : vector<1x8x1xf32> -> vector<1x8x1xf32>
    %105 = vector.broadcast %104 : vector<1x8x1xf32> to vector<1x8x8xf32>
    %106 = arith.mulf %101, %105 : vector<1x8x8xf32>
    %c0_40 = arith.constant 0 : index
    %c0_41 = arith.constant 0 : index
    %107 = vector.load %arg10[%c0_40, %c0_41] : memref<128x256xf32, #tpu.memory_space<vmem>>, vector<128x256xf32>
    %cst_42 = arith.constant dense<0.000000e+00> : vector<8x256xf32>
    %108 = tpu.matmul %48, %107, %cst_42 {dimension_numbers = #tpu.dot_dimension_numbers<[1], [0], [0], [1], [0, 0, 1, 1], [], []>} : vector<8x128xf32>, vector<128x256xf32>, vector<8x256xf32> -> vector<8x256xf32>
    %109 = vector.extract_strided_slice %108 {offsets = [0, 0], sizes = [8, 128], strides = [1, 1]} : vector<8x256xf32> to vector<8x128xf32>
    %110 = vector.shape_cast %109 : vector<8x128xf32> to vector<1x8x128xf32>
    %111 = vector.extract_strided_slice %108 {offsets = [0, 128], sizes = [8, 128], strides = [1, 1]} : vector<8x256xf32> to vector<8x128xf32>
    %112 = vector.shape_cast %111 : vector<8x128xf32> to vector<1x8x128xf32>
    %113 = vector.extract_strided_slice %90 {offsets = [0, 0, 0], sizes = [1, 8, 1], strides = [1, 1, 1]} : vector<1x8x8xf32> to vector<1x8x1xf32>
    %114 = vector.extract_strided_slice %110 {offsets = [0, 0, 0], sizes = [1, 1, 128], strides = [1, 1, 1]} : vector<1x8x128xf32> to vector<1x1x128xf32>
    %115 = vector.broadcast %113 : vector<1x8x1xf32> to vector<1x8x128xf32>
    %116 = vector.broadcast %114 : vector<1x1x128xf32> to vector<1x8x128xf32>
    %117 = arith.mulf %115, %116 : vector<1x8x128xf32>
    %118 = vector.extract_strided_slice %90 {offsets = [0, 0, 1], sizes = [1, 8, 1], strides = [1, 1, 1]} : vector<1x8x8xf32> to vector<1x8x1xf32>
    %119 = vector.extract_strided_slice %110 {offsets = [0, 1, 0], sizes = [1, 1, 128], strides = [1, 1, 1]} : vector<1x8x128xf32> to vector<1x1x128xf32>
    %120 = vector.broadcast %118 : vector<1x8x1xf32> to vector<1x8x128xf32>
    %121 = vector.broadcast %119 : vector<1x1x128xf32> to vector<1x8x128xf32>
    %122 = arith.mulf %120, %121 : vector<1x8x128xf32>
    %123 = arith.addf %117, %122 : vector<1x8x128xf32>
    %124 = vector.extract_strided_slice %90 {offsets = [0, 0, 2], sizes = [1, 8, 1], strides = [1, 1, 1]} : vector<1x8x8xf32> to vector<1x8x1xf32>
    %125 = vector.extract_strided_slice %110 {offsets = [0, 2, 0], sizes = [1, 1, 128], strides = [1, 1, 1]} : vector<1x8x128xf32> to vector<1x1x128xf32>
    %126 = vector.broadcast %124 : vector<1x8x1xf32> to vector<1x8x128xf32>
    %127 = vector.broadcast %125 : vector<1x1x128xf32> to vector<1x8x128xf32>
    %128 = arith.mulf %126, %127 : vector<1x8x128xf32>
    %129 = arith.addf %123, %128 : vector<1x8x128xf32>
    %130 = vector.extract_strided_slice %90 {offsets = [0, 0, 3], sizes = [1, 8, 1], strides = [1, 1, 1]} : vector<1x8x8xf32> to vector<1x8x1xf32>
    %131 = vector.extract_strided_slice %110 {offsets = [0, 3, 0], sizes = [1, 1, 128], strides = [1, 1, 1]} : vector<1x8x128xf32> to vector<1x1x128xf32>
    %132 = vector.broadcast %130 : vector<1x8x1xf32> to vector<1x8x128xf32>
    %133 = vector.broadcast %131 : vector<1x1x128xf32> to vector<1x8x128xf32>
    %134 = arith.mulf %132, %133 : vector<1x8x128xf32>
    %135 = arith.addf %129, %134 : vector<1x8x128xf32>
    %136 = vector.extract_strided_slice %90 {offsets = [0, 0, 4], sizes = [1, 8, 1], strides = [1, 1, 1]} : vector<1x8x8xf32> to vector<1x8x1xf32>
    %137 = vector.extract_strided_slice %110 {offsets = [0, 4, 0], sizes = [1, 1, 128], strides = [1, 1, 1]} : vector<1x8x128xf32> to vector<1x1x128xf32>
    %138 = vector.broadcast %136 : vector<1x8x1xf32> to vector<1x8x128xf32>
    %139 = vector.broadcast %137 : vector<1x1x128xf32> to vector<1x8x128xf32>
    %140 = arith.mulf %138, %139 : vector<1x8x128xf32>
    %141 = arith.addf %135, %140 : vector<1x8x128xf32>
    %142 = vector.extract_strided_slice %90 {offsets = [0, 0, 5], sizes = [1, 8, 1], strides = [1, 1, 1]} : vector<1x8x8xf32> to vector<1x8x1xf32>
    %143 = vector.extract_strided_slice %110 {offsets = [0, 5, 0], sizes = [1, 1, 128], strides = [1, 1, 1]} : vector<1x8x128xf32> to vector<1x1x128xf32>
    %144 = vector.broadcast %142 : vector<1x8x1xf32> to vector<1x8x128xf32>
    %145 = vector.broadcast %143 : vector<1x1x128xf32> to vector<1x8x128xf32>
    %146 = arith.mulf %144, %145 : vector<1x8x128xf32>
    %147 = arith.addf %141, %146 : vector<1x8x128xf32>
    %148 = vector.extract_strided_slice %90 {offsets = [0, 0, 6], sizes = [1, 8, 1], strides = [1, 1, 1]} : vector<1x8x8xf32> to vector<1x8x1xf32>
    %149 = vector.extract_strided_slice %110 {offsets = [0, 6, 0], sizes = [1, 1, 128], strides = [1, 1, 1]} : vector<1x8x128xf32> to vector<1x1x128xf32>
    %150 = vector.broadcast %148 : vector<1x8x1xf32> to vector<1x8x128xf32>
    %151 = vector.broadcast %149 : vector<1x1x128xf32> to vector<1x8x128xf32>
    %152 = arith.mulf %150, %151 : vector<1x8x128xf32>
    %153 = arith.addf %147, %152 : vector<1x8x128xf32>
    %154 = vector.extract_strided_slice %90 {offsets = [0, 0, 7], sizes = [1, 8, 1], strides = [1, 1, 1]} : vector<1x8x8xf32> to vector<1x8x1xf32>
    %155 = vector.extract_strided_slice %110 {offsets = [0, 7, 0], sizes = [1, 1, 128], strides = [1, 1, 1]} : vector<1x8x128xf32> to vector<1x1x128xf32>
    %156 = vector.broadcast %154 : vector<1x8x1xf32> to vector<1x8x128xf32>
    %157 = vector.broadcast %155 : vector<1x1x128xf32> to vector<1x8x128xf32>
    %158 = arith.mulf %156, %157 : vector<1x8x128xf32>
    %159 = arith.addf %153, %158 : vector<1x8x128xf32>
    %160 = arith.addf %159, %49 : vector<1x8x128xf32>
    %cst_43 = arith.constant 1.702000e+00 : f32
    %161 = vector.broadcast %cst_43 : f32 to vector<1x8x128xf32>
    %162 = arith.mulf %161, %160 : vector<1x8x128xf32>
    %163 = arith.negf %162 : vector<1x8x128xf32>
    %164 = math.exp %163 : vector<1x8x128xf32>
    %cst_44 = arith.constant 1.000000e+00 : f32
    %165 = vector.broadcast %cst_44 : f32 to vector<1x8x128xf32>
    %166 = arith.addf %165, %164 : vector<1x8x128xf32>
    %167 = arith.divf %165, %166 : vector<1x8x128xf32>
    %168 = arith.mulf %160, %167 : vector<1x8x128xf32>
    %169 = vector.extract_strided_slice %106 {offsets = [0, 0, 0], sizes = [1, 8, 1], strides = [1, 1, 1]} : vector<1x8x8xf32> to vector<1x8x1xf32>
    %170 = vector.extract_strided_slice %112 {offsets = [0, 0, 0], sizes = [1, 1, 128], strides = [1, 1, 1]} : vector<1x8x128xf32> to vector<1x1x128xf32>
    %171 = vector.broadcast %169 : vector<1x8x1xf32> to vector<1x8x128xf32>
    %172 = vector.broadcast %170 : vector<1x1x128xf32> to vector<1x8x128xf32>
    %173 = arith.mulf %171, %172 : vector<1x8x128xf32>
    %174 = vector.extract_strided_slice %106 {offsets = [0, 0, 1], sizes = [1, 8, 1], strides = [1, 1, 1]} : vector<1x8x8xf32> to vector<1x8x1xf32>
    %175 = vector.extract_strided_slice %112 {offsets = [0, 1, 0], sizes = [1, 1, 128], strides = [1, 1, 1]} : vector<1x8x128xf32> to vector<1x1x128xf32>
    %176 = vector.broadcast %174 : vector<1x8x1xf32> to vector<1x8x128xf32>
    %177 = vector.broadcast %175 : vector<1x1x128xf32> to vector<1x8x128xf32>
    %178 = arith.mulf %176, %177 : vector<1x8x128xf32>
    %179 = arith.addf %173, %178 : vector<1x8x128xf32>
    %180 = vector.extract_strided_slice %106 {offsets = [0, 0, 2], sizes = [1, 8, 1], strides = [1, 1, 1]} : vector<1x8x8xf32> to vector<1x8x1xf32>
    %181 = vector.extract_strided_slice %112 {offsets = [0, 2, 0], sizes = [1, 1, 128], strides = [1, 1, 1]} : vector<1x8x128xf32> to vector<1x1x128xf32>
    %182 = vector.broadcast %180 : vector<1x8x1xf32> to vector<1x8x128xf32>
    %183 = vector.broadcast %181 : vector<1x1x128xf32> to vector<1x8x128xf32>
    %184 = arith.mulf %182, %183 : vector<1x8x128xf32>
    %185 = arith.addf %179, %184 : vector<1x8x128xf32>
    %186 = vector.extract_strided_slice %106 {offsets = [0, 0, 3], sizes = [1, 8, 1], strides = [1, 1, 1]} : vector<1x8x8xf32> to vector<1x8x1xf32>
    %187 = vector.extract_strided_slice %112 {offsets = [0, 3, 0], sizes = [1, 1, 128], strides = [1, 1, 1]} : vector<1x8x128xf32> to vector<1x1x128xf32>
    %188 = vector.broadcast %186 : vector<1x8x1xf32> to vector<1x8x128xf32>
    %189 = vector.broadcast %187 : vector<1x1x128xf32> to vector<1x8x128xf32>
    %190 = arith.mulf %188, %189 : vector<1x8x128xf32>
    %191 = arith.addf %185, %190 : vector<1x8x128xf32>
    %192 = vector.extract_strided_slice %106 {offsets = [0, 0, 4], sizes = [1, 8, 1], strides = [1, 1, 1]} : vector<1x8x8xf32> to vector<1x8x1xf32>
    %193 = vector.extract_strided_slice %112 {offsets = [0, 4, 0], sizes = [1, 1, 128], strides = [1, 1, 1]} : vector<1x8x128xf32> to vector<1x1x128xf32>
    %194 = vector.broadcast %192 : vector<1x8x1xf32> to vector<1x8x128xf32>
    %195 = vector.broadcast %193 : vector<1x1x128xf32> to vector<1x8x128xf32>
    %196 = arith.mulf %194, %195 : vector<1x8x128xf32>
    %197 = arith.addf %191, %196 : vector<1x8x128xf32>
    %198 = vector.extract_strided_slice %106 {offsets = [0, 0, 5], sizes = [1, 8, 1], strides = [1, 1, 1]} : vector<1x8x8xf32> to vector<1x8x1xf32>
    %199 = vector.extract_strided_slice %112 {offsets = [0, 5, 0], sizes = [1, 1, 128], strides = [1, 1, 1]} : vector<1x8x128xf32> to vector<1x1x128xf32>
    %200 = vector.broadcast %198 : vector<1x8x1xf32> to vector<1x8x128xf32>
    %201 = vector.broadcast %199 : vector<1x1x128xf32> to vector<1x8x128xf32>
    %202 = arith.mulf %200, %201 : vector<1x8x128xf32>
    %203 = arith.addf %197, %202 : vector<1x8x128xf32>
    %204 = vector.extract_strided_slice %106 {offsets = [0, 0, 6], sizes = [1, 8, 1], strides = [1, 1, 1]} : vector<1x8x8xf32> to vector<1x8x1xf32>
    %205 = vector.extract_strided_slice %112 {offsets = [0, 6, 0], sizes = [1, 1, 128], strides = [1, 1, 1]} : vector<1x8x128xf32> to vector<1x1x128xf32>
    %206 = vector.broadcast %204 : vector<1x8x1xf32> to vector<1x8x128xf32>
    %207 = vector.broadcast %205 : vector<1x1x128xf32> to vector<1x8x128xf32>
    %208 = arith.mulf %206, %207 : vector<1x8x128xf32>
    %209 = arith.addf %203, %208 : vector<1x8x128xf32>
    %210 = vector.extract_strided_slice %106 {offsets = [0, 0, 7], sizes = [1, 8, 1], strides = [1, 1, 1]} : vector<1x8x8xf32> to vector<1x8x1xf32>
    %211 = vector.extract_strided_slice %112 {offsets = [0, 7, 0], sizes = [1, 1, 128], strides = [1, 1, 1]} : vector<1x8x128xf32> to vector<1x1x128xf32>
    %212 = vector.broadcast %210 : vector<1x8x1xf32> to vector<1x8x128xf32>
    %213 = vector.broadcast %211 : vector<1x1x128xf32> to vector<1x8x128xf32>
    %214 = arith.mulf %212, %213 : vector<1x8x128xf32>
    %215 = arith.addf %209, %214 : vector<1x8x128xf32>
    %216 = arith.addf %215, %49 : vector<1x8x128xf32>
    %cst_45 = arith.constant 1.702000e+00 : f32
    %217 = vector.broadcast %cst_45 : f32 to vector<1x8x128xf32>
    %218 = arith.mulf %217, %216 : vector<1x8x128xf32>
    %219 = arith.negf %218 : vector<1x8x128xf32>
    %220 = math.exp %219 : vector<1x8x128xf32>
    %cst_46 = arith.constant 1.000000e+00 : f32
    %221 = vector.broadcast %cst_46 : f32 to vector<1x8x128xf32>
    %222 = arith.addf %221, %220 : vector<1x8x128xf32>
    %223 = arith.divf %221, %222 : vector<1x8x128xf32>
    %224 = arith.mulf %216, %223 : vector<1x8x128xf32>
    %225 = vector.shape_cast %168 : vector<1x8x128xf32> to vector<8x128xf32>
    %c0_47 = arith.constant 0 : index
    %c0_48 = arith.constant 0 : index
    %226 = vector.load %arg11[%c0_47, %c0_48] : memref<128x128xf32, #tpu.memory_space<vmem>>, vector<128x128xf32>
    %cst_49 = arith.constant dense<0.000000e+00> : vector<8x128xf32>
    %227 = tpu.matmul %225, %226, %cst_49 {dimension_numbers = #tpu.dot_dimension_numbers<[1], [0], [0], [1], [0, 0, 1, 1], [], []>} : vector<8x128xf32>, vector<128x128xf32>, vector<8x128xf32> -> vector<8x128xf32>
    %228 = vector.shape_cast %227 : vector<8x128xf32> to vector<1x8x128xf32>
    %229 = vector.extract_strided_slice %90 {offsets = [0, 0, 0], sizes = [1, 8, 1], strides = [1, 1, 1]} : vector<1x8x8xf32> to vector<1x8x1xf32>
    %230 = vector.extract_strided_slice %228 {offsets = [0, 0, 0], sizes = [1, 1, 128], strides = [1, 1, 1]} : vector<1x8x128xf32> to vector<1x1x128xf32>
    %231 = vector.broadcast %229 : vector<1x8x1xf32> to vector<1x8x128xf32>
    %232 = vector.broadcast %230 : vector<1x1x128xf32> to vector<1x8x128xf32>
    %233 = arith.mulf %231, %232 : vector<1x8x128xf32>
    %234 = vector.extract_strided_slice %90 {offsets = [0, 0, 1], sizes = [1, 8, 1], strides = [1, 1, 1]} : vector<1x8x8xf32> to vector<1x8x1xf32>
    %235 = vector.extract_strided_slice %228 {offsets = [0, 1, 0], sizes = [1, 1, 128], strides = [1, 1, 1]} : vector<1x8x128xf32> to vector<1x1x128xf32>
    %236 = vector.broadcast %234 : vector<1x8x1xf32> to vector<1x8x128xf32>
    %237 = vector.broadcast %235 : vector<1x1x128xf32> to vector<1x8x128xf32>
    %238 = arith.mulf %236, %237 : vector<1x8x128xf32>
    %239 = arith.addf %233, %238 : vector<1x8x128xf32>
    %240 = vector.extract_strided_slice %90 {offsets = [0, 0, 2], sizes = [1, 8, 1], strides = [1, 1, 1]} : vector<1x8x8xf32> to vector<1x8x1xf32>
    %241 = vector.extract_strided_slice %228 {offsets = [0, 2, 0], sizes = [1, 1, 128], strides = [1, 1, 1]} : vector<1x8x128xf32> to vector<1x1x128xf32>
    %242 = vector.broadcast %240 : vector<1x8x1xf32> to vector<1x8x128xf32>
    %243 = vector.broadcast %241 : vector<1x1x128xf32> to vector<1x8x128xf32>
    %244 = arith.mulf %242, %243 : vector<1x8x128xf32>
    %245 = arith.addf %239, %244 : vector<1x8x128xf32>
    %246 = vector.extract_strided_slice %90 {offsets = [0, 0, 3], sizes = [1, 8, 1], strides = [1, 1, 1]} : vector<1x8x8xf32> to vector<1x8x1xf32>
    %247 = vector.extract_strided_slice %228 {offsets = [0, 3, 0], sizes = [1, 1, 128], strides = [1, 1, 1]} : vector<1x8x128xf32> to vector<1x1x128xf32>
    %248 = vector.broadcast %246 : vector<1x8x1xf32> to vector<1x8x128xf32>
    %249 = vector.broadcast %247 : vector<1x1x128xf32> to vector<1x8x128xf32>
    %250 = arith.mulf %248, %249 : vector<1x8x128xf32>
    %251 = arith.addf %245, %250 : vector<1x8x128xf32>
    %252 = vector.extract_strided_slice %90 {offsets = [0, 0, 4], sizes = [1, 8, 1], strides = [1, 1, 1]} : vector<1x8x8xf32> to vector<1x8x1xf32>
    %253 = vector.extract_strided_slice %228 {offsets = [0, 4, 0], sizes = [1, 1, 128], strides = [1, 1, 1]} : vector<1x8x128xf32> to vector<1x1x128xf32>
    %254 = vector.broadcast %252 : vector<1x8x1xf32> to vector<1x8x128xf32>
    %255 = vector.broadcast %253 : vector<1x1x128xf32> to vector<1x8x128xf32>
    %256 = arith.mulf %254, %255 : vector<1x8x128xf32>
    %257 = arith.addf %251, %256 : vector<1x8x128xf32>
    %258 = vector.extract_strided_slice %90 {offsets = [0, 0, 5], sizes = [1, 8, 1], strides = [1, 1, 1]} : vector<1x8x8xf32> to vector<1x8x1xf32>
    %259 = vector.extract_strided_slice %228 {offsets = [0, 5, 0], sizes = [1, 1, 128], strides = [1, 1, 1]} : vector<1x8x128xf32> to vector<1x1x128xf32>
    %260 = vector.broadcast %258 : vector<1x8x1xf32> to vector<1x8x128xf32>
    %261 = vector.broadcast %259 : vector<1x1x128xf32> to vector<1x8x128xf32>
    %262 = arith.mulf %260, %261 : vector<1x8x128xf32>
    %263 = arith.addf %257, %262 : vector<1x8x128xf32>
    %264 = vector.extract_strided_slice %90 {offsets = [0, 0, 6], sizes = [1, 8, 1], strides = [1, 1, 1]} : vector<1x8x8xf32> to vector<1x8x1xf32>
    %265 = vector.extract_strided_slice %228 {offsets = [0, 6, 0], sizes = [1, 1, 128], strides = [1, 1, 1]} : vector<1x8x128xf32> to vector<1x1x128xf32>
    %266 = vector.broadcast %264 : vector<1x8x1xf32> to vector<1x8x128xf32>
    %267 = vector.broadcast %265 : vector<1x1x128xf32> to vector<1x8x128xf32>
    %268 = arith.mulf %266, %267 : vector<1x8x128xf32>
    %269 = arith.addf %263, %268 : vector<1x8x128xf32>
    %270 = vector.extract_strided_slice %90 {offsets = [0, 0, 7], sizes = [1, 8, 1], strides = [1, 1, 1]} : vector<1x8x8xf32> to vector<1x8x1xf32>
    %271 = vector.extract_strided_slice %228 {offsets = [0, 7, 0], sizes = [1, 1, 128], strides = [1, 1, 1]} : vector<1x8x128xf32> to vector<1x1x128xf32>
    %272 = vector.broadcast %270 : vector<1x8x1xf32> to vector<1x8x128xf32>
    %273 = vector.broadcast %271 : vector<1x1x128xf32> to vector<1x8x128xf32>
    %274 = arith.mulf %272, %273 : vector<1x8x128xf32>
    %275 = arith.addf %269, %274 : vector<1x8x128xf32>
    %276 = arith.addf %275, %168 : vector<1x8x128xf32>
    %cst_50 = arith.constant 1.702000e+00 : f32
    %277 = vector.broadcast %cst_50 : f32 to vector<1x8x128xf32>
    %278 = arith.mulf %277, %276 : vector<1x8x128xf32>
    %279 = arith.negf %278 : vector<1x8x128xf32>
    %280 = math.exp %279 : vector<1x8x128xf32>
    %cst_51 = arith.constant 1.000000e+00 : f32
    %281 = vector.broadcast %cst_51 : f32 to vector<1x8x128xf32>
    %282 = arith.addf %281, %280 : vector<1x8x128xf32>
    %283 = arith.divf %281, %282 : vector<1x8x128xf32>
    %284 = arith.mulf %276, %283 : vector<1x8x128xf32>
    %285 = vector.shape_cast %224 : vector<1x8x128xf32> to vector<8x128xf32>
    %c0_52 = arith.constant 0 : index
    %c0_53 = arith.constant 0 : index
    %286 = vector.load %arg12[%c0_52, %c0_53] : memref<128x128xf32, #tpu.memory_space<vmem>>, vector<128x128xf32>
    %cst_54 = arith.constant dense<0.000000e+00> : vector<8x128xf32>
    %287 = tpu.matmul %285, %286, %cst_54 {dimension_numbers = #tpu.dot_dimension_numbers<[1], [0], [0], [1], [0, 0, 1, 1], [], []>} : vector<8x128xf32>, vector<128x128xf32>, vector<8x128xf32> -> vector<8x128xf32>
    %288 = vector.shape_cast %287 : vector<8x128xf32> to vector<1x8x128xf32>
    %289 = vector.extract_strided_slice %106 {offsets = [0, 0, 0], sizes = [1, 8, 1], strides = [1, 1, 1]} : vector<1x8x8xf32> to vector<1x8x1xf32>
    %290 = vector.extract_strided_slice %288 {offsets = [0, 0, 0], sizes = [1, 1, 128], strides = [1, 1, 1]} : vector<1x8x128xf32> to vector<1x1x128xf32>
    %291 = vector.broadcast %289 : vector<1x8x1xf32> to vector<1x8x128xf32>
    %292 = vector.broadcast %290 : vector<1x1x128xf32> to vector<1x8x128xf32>
    %293 = arith.mulf %291, %292 : vector<1x8x128xf32>
    %294 = vector.extract_strided_slice %106 {offsets = [0, 0, 1], sizes = [1, 8, 1], strides = [1, 1, 1]} : vector<1x8x8xf32> to vector<1x8x1xf32>
    %295 = vector.extract_strided_slice %288 {offsets = [0, 1, 0], sizes = [1, 1, 128], strides = [1, 1, 1]} : vector<1x8x128xf32> to vector<1x1x128xf32>
    %296 = vector.broadcast %294 : vector<1x8x1xf32> to vector<1x8x128xf32>
    %297 = vector.broadcast %295 : vector<1x1x128xf32> to vector<1x8x128xf32>
    %298 = arith.mulf %296, %297 : vector<1x8x128xf32>
    %299 = arith.addf %293, %298 : vector<1x8x128xf32>
    %300 = vector.extract_strided_slice %106 {offsets = [0, 0, 2], sizes = [1, 8, 1], strides = [1, 1, 1]} : vector<1x8x8xf32> to vector<1x8x1xf32>
    %301 = vector.extract_strided_slice %288 {offsets = [0, 2, 0], sizes = [1, 1, 128], strides = [1, 1, 1]} : vector<1x8x128xf32> to vector<1x1x128xf32>
    %302 = vector.broadcast %300 : vector<1x8x1xf32> to vector<1x8x128xf32>
    %303 = vector.broadcast %301 : vector<1x1x128xf32> to vector<1x8x128xf32>
    %304 = arith.mulf %302, %303 : vector<1x8x128xf32>
    %305 = arith.addf %299, %304 : vector<1x8x128xf32>
    %306 = vector.extract_strided_slice %106 {offsets = [0, 0, 3], sizes = [1, 8, 1], strides = [1, 1, 1]} : vector<1x8x8xf32> to vector<1x8x1xf32>
    %307 = vector.extract_strided_slice %288 {offsets = [0, 3, 0], sizes = [1, 1, 128], strides = [1, 1, 1]} : vector<1x8x128xf32> to vector<1x1x128xf32>
    %308 = vector.broadcast %306 : vector<1x8x1xf32> to vector<1x8x128xf32>
    %309 = vector.broadcast %307 : vector<1x1x128xf32> to vector<1x8x128xf32>
    %310 = arith.mulf %308, %309 : vector<1x8x128xf32>
    %311 = arith.addf %305, %310 : vector<1x8x128xf32>
    %312 = vector.extract_strided_slice %106 {offsets = [0, 0, 4], sizes = [1, 8, 1], strides = [1, 1, 1]} : vector<1x8x8xf32> to vector<1x8x1xf32>
    %313 = vector.extract_strided_slice %288 {offsets = [0, 4, 0], sizes = [1, 1, 128], strides = [1, 1, 1]} : vector<1x8x128xf32> to vector<1x1x128xf32>
    %314 = vector.broadcast %312 : vector<1x8x1xf32> to vector<1x8x128xf32>
    %315 = vector.broadcast %313 : vector<1x1x128xf32> to vector<1x8x128xf32>
    %316 = arith.mulf %314, %315 : vector<1x8x128xf32>
    %317 = arith.addf %311, %316 : vector<1x8x128xf32>
    %318 = vector.extract_strided_slice %106 {offsets = [0, 0, 5], sizes = [1, 8, 1], strides = [1, 1, 1]} : vector<1x8x8xf32> to vector<1x8x1xf32>
    %319 = vector.extract_strided_slice %288 {offsets = [0, 5, 0], sizes = [1, 1, 128], strides = [1, 1, 1]} : vector<1x8x128xf32> to vector<1x1x128xf32>
    %320 = vector.broadcast %318 : vector<1x8x1xf32> to vector<1x8x128xf32>
    %321 = vector.broadcast %319 : vector<1x1x128xf32> to vector<1x8x128xf32>
    %322 = arith.mulf %320, %321 : vector<1x8x128xf32>
    %323 = arith.addf %317, %322 : vector<1x8x128xf32>
    %324 = vector.extract_strided_slice %106 {offsets = [0, 0, 6], sizes = [1, 8, 1], strides = [1, 1, 1]} : vector<1x8x8xf32> to vector<1x8x1xf32>
    %325 = vector.extract_strided_slice %288 {offsets = [0, 6, 0], sizes = [1, 1, 128], strides = [1, 1, 1]} : vector<1x8x128xf32> to vector<1x1x128xf32>
    %326 = vector.broadcast %324 : vector<1x8x1xf32> to vector<1x8x128xf32>
    %327 = vector.broadcast %325 : vector<1x1x128xf32> to vector<1x8x128xf32>
    %328 = arith.mulf %326, %327 : vector<1x8x128xf32>
    %329 = arith.addf %323, %328 : vector<1x8x128xf32>
    %330 = vector.extract_strided_slice %106 {offsets = [0, 0, 7], sizes = [1, 8, 1], strides = [1, 1, 1]} : vector<1x8x8xf32> to vector<1x8x1xf32>
    %331 = vector.extract_strided_slice %288 {offsets = [0, 7, 0], sizes = [1, 1, 128], strides = [1, 1, 1]} : vector<1x8x128xf32> to vector<1x1x128xf32>
    %332 = vector.broadcast %330 : vector<1x8x1xf32> to vector<1x8x128xf32>
    %333 = vector.broadcast %331 : vector<1x1x128xf32> to vector<1x8x128xf32>
    %334 = arith.mulf %332, %333 : vector<1x8x128xf32>
    %335 = arith.addf %329, %334 : vector<1x8x128xf32>
    %336 = arith.addf %335, %224 : vector<1x8x128xf32>
    %cst_55 = arith.constant 1.702000e+00 : f32
    %337 = vector.broadcast %cst_55 : f32 to vector<1x8x128xf32>
    %338 = arith.mulf %337, %336 : vector<1x8x128xf32>
    %339 = arith.negf %338 : vector<1x8x128xf32>
    %340 = math.exp %339 : vector<1x8x128xf32>
    %cst_56 = arith.constant 1.000000e+00 : f32
    %341 = vector.broadcast %cst_56 : f32 to vector<1x8x128xf32>
    %342 = arith.addf %341, %340 : vector<1x8x128xf32>
    %343 = arith.divf %341, %342 : vector<1x8x128xf32>
    %344 = arith.mulf %336, %343 : vector<1x8x128xf32>
    %345 = vector.shape_cast %284 : vector<1x8x128xf32> to vector<8x128xf32>
    %346 = vector.shape_cast %344 : vector<1x8x128xf32> to vector<8x128xf32>
    %347 = tpu.concatenate %345, %346 in 1 : vector<8x128xf32>, vector<8x128xf32> -> vector<8x256xf32>
    %c0_57 = arith.constant 0 : index
    %c0_58 = arith.constant 0 : index
    %348 = vector.load %arg13[%c0_57, %c0_58] : memref<256x128xf32, #tpu.memory_space<vmem>>, vector<256x128xf32>
    %cst_59 = arith.constant dense<0.000000e+00> : vector<8x128xf32>
    %349 = tpu.matmul %347, %348, %cst_59 {dimension_numbers = #tpu.dot_dimension_numbers<[1], [0], [0], [1], [0, 0, 1, 1], [], []>} : vector<8x256xf32>, vector<256x128xf32>, vector<8x128xf32> -> vector<8x128xf32>
    %c0_60 = arith.constant 0 : index
    %c0_61 = arith.constant 0 : index
    %350 = vector.load %arg14[%c0_60, %c0_61] : memref<1x128xf32, #tpu.memory_space<vmem>>, vector<1x128xf32>
    %351 = vector.broadcast %350 : vector<1x128xf32> to vector<8x128xf32>
    %352 = arith.addf %349, %351 : vector<8x128xf32>
    %353 = vector.shape_cast %352 : vector<8x128xf32> to vector<1x8x128xf32>
    %c0_62 = arith.constant 0 : index
    %c0_63 = arith.constant 0 : index
    %c0_64 = arith.constant 0 : index
    %354 = vector.load %arg15[%c0_62, %c0_63, %c0_64] : memref<1x8x128xf32, #tpu.memory_space<vmem>>, vector<1x8x128xf32>
    tpu.vector_store %arg15[%c0_62, %c0_63, %c0_64], %353 {strides = array<i32>} : memref<1x8x128xf32, #tpu.memory_space<vmem>>, vector<1x8x128xf32>,
    return
  }
  func.func @transform_0(%arg0: i32, %arg1: memref<2xi32, #tpu.memory_space<smem>>) -> (i32, i32, i32) {
    %c0_i32 = arith.constant 0 : i32
    %c0_i32_0 = arith.constant 0 : i32
    %c0_i32_1 = arith.constant 0 : i32
    return %arg0, %c0_i32, %c0_i32_0 : i32, i32, i32
  }
  func.func @transform_1(%arg0: i32, %arg1: memref<2xi32, #tpu.memory_space<smem>>) -> (i32, i32) {
    %c0_i32 = arith.constant 0 : i32
    %c0_i32_0 = arith.constant 0 : i32
    %c0_i32_1 = arith.constant 0 : i32
    return %c0_i32, %c0_i32_0 : i32, i32
  }
  func.func @transform_2(%arg0: i32, %arg1: memref<2xi32, #tpu.memory_space<smem>>) -> (i32, i32) {
    %c0_i32 = arith.constant 0 : i32
    %c0_i32_0 = arith.constant 0 : i32
    %c0_i32_1 = arith.constant 0 : i32
    return %c0_i32, %c0_i32_0 : i32, i32
  }
  func.func @transform_3(%arg0: i32, %arg1: memref<2xi32, #tpu.memory_space<smem>>) -> (i32, i32) {
    %c0_i32 = arith.constant 0 : i32
    %c0_i32_0 = arith.constant 0 : i32
    %c0_i32_1 = arith.constant 0 : i32
    return %c0_i32, %c0_i32_0 : i32, i32
  }
  func.func @transform_4(%arg0: i32, %arg1: memref<2xi32, #tpu.memory_space<smem>>) -> (i32, i32) {
    %c0_i32 = arith.constant 0 : i32
    %c0_i32_0 = arith.constant 0 : i32
    %c0_i32_1 = arith.constant 0 : i32
    return %c0_i32, %c0_i32_0 : i32, i32
  }
  func.func @transform_5(%arg0: i32, %arg1: memref<2xi32, #tpu.memory_space<smem>>) -> (i32, i32) {
    %c0_i32 = arith.constant 0 : i32
    %c0_i32_0 = arith.constant 0 : i32
    %c0_i32_1 = arith.constant 0 : i32
    return %c0_i32, %c0_i32_0 : i32, i32
  }
  func.func @transform_6(%arg0: i32, %arg1: memref<2xi32, #tpu.memory_space<smem>>) -> (i32, i32) {
    %c0_i32 = arith.constant 0 : i32
    %c0_i32_0 = arith.constant 0 : i32
    %c0_i32_1 = arith.constant 0 : i32
    return %c0_i32, %c0_i32_0 : i32, i32
  }
  func.func @transform_7(%arg0: i32, %arg1: memref<2xi32, #tpu.memory_space<smem>>) -> (i32, i32) {
    %c0_i32 = arith.constant 0 : i32
    %c0_i32_0 = arith.constant 0 : i32
    %c0_i32_1 = arith.constant 0 : i32
    return %c0_i32, %c0_i32_0 : i32, i32
  }
  func.func @transform_8(%arg0: i32, %arg1: memref<2xi32, #tpu.memory_space<smem>>) -> (i32, i32) {
    %c0_i32 = arith.constant 0 : i32
    %c0_i32_0 = arith.constant 0 : i32
    %c0_i32_1 = arith.constant 0 : i32
    return %c0_i32, %c0_i32_0 : i32, i32
  }
  func.func @transform_9(%arg0: i32, %arg1: memref<2xi32, #tpu.memory_space<smem>>) -> (i32, i32) {
    %c0_i32 = arith.constant 0 : i32
    %c0_i32_0 = arith.constant 0 : i32
    %c0_i32_1 = arith.constant 0 : i32
    return %c0_i32, %c0_i32_0 : i32, i32
  }
  func.func @transform_10(%arg0: i32, %arg1: memref<2xi32, #tpu.memory_space<smem>>) -> (i32, i32) {
    %c0_i32 = arith.constant 0 : i32
    %c0_i32_0 = arith.constant 0 : i32
    %c0_i32_1 = arith.constant 0 : i32
    return %c0_i32, %c0_i32_0 : i32, i32
  }
  func.func @transform_11(%arg0: i32, %arg1: memref<2xi32, #tpu.memory_space<smem>>) -> (i32, i32) {
    %c0_i32 = arith.constant 0 : i32
    %c0_i32_0 = arith.constant 0 : i32
    %c0_i32_1 = arith.constant 0 : i32
    return %c0_i32, %c0_i32_0 : i32, i32
  }
  func.func @transform_12(%arg0: i32, %arg1: memref<2xi32, #tpu.memory_space<smem>>) -> (i32, i32) {
    %c0_i32 = arith.constant 0 : i32
    %c0_i32_0 = arith.constant 0 : i32
    %c0_i32_1 = arith.constant 0 : i32
    return %c0_i32, %c0_i32_0 : i32, i32
  }
  func.func @transform_13(%arg0: i32, %arg1: memref<2xi32, #tpu.memory_space<smem>>) -> (i32, i32, i32) {
    %c0_i32 = arith.constant 0 : i32
    %c0_i32_0 = arith.constant 0 : i32
    %c0_i32_1 = arith.constant 0 : i32
    return %arg0, %c0_i32, %c0_i32_0 : i32, i32, i32
  }
}

</mosaic_0001>

<llo_original>
// kernel: tpu_custom_call.1
$region0: #{tpu_custom_call.1}
  #allocation0 [shape = 'u32[]', space=smem, size = 0x4, offset = 0x4, fixed_abs, tag = 'smem constant byte address 0x4 - core index']
  #allocation1 [shape = 'u32[144,128]{1,0:T(1,128)}', space=vmem, size = 0x12000, scoped, tag = 'internal scratch']
  #allocation2 [shape = 's32[1]{0}', space=sflag, size = 0x4, scoped, tag = 'scoped memory for tpu_custom_call.1']
  #allocation3 [shape = 'u8[512]{0}', space=smem, size = 0x200, scoped, tag = 'prefetched SMEM operand 0']
  %s0 = inlined_call_operand.hbm [shape: s32[2], index: 0, kind: input, shape index: {}]
  %s1 = inlined_call_operand.hbm [shape: f32[2,8,128], index: 1, kind: input, shape index: {}]
  %s2 = inlined_call_operand.hbm [shape: f32[8,8], index: 2, kind: input, shape index: {}]
  %s3 = inlined_call_operand.hbm [shape: f32[128,128], index: 3, kind: input, shape index: {}]
  %s4 = inlined_call_operand.vmem [shape: f32[1,128], index: 4, kind: input, shape index: {}]
  %s5 = inlined_call_operand.hbm [shape: f32[128,384], index: 5, kind: input, shape index: {}]
  %s6 = inlined_call_operand.vmem [shape: f32[1,128], index: 6, kind: input, shape index: {}]
  %s7 = inlined_call_operand.hbm [shape: f32[128,128], index: 7, kind: input, shape index: {}]
  %s8 = inlined_call_operand.vmem [shape: f32[1,128], index: 8, kind: input, shape index: {}]
  %s9 = inlined_call_operand.hbm [shape: f32[128,256], index: 9, kind: input, shape index: {}]
  %s10 = inlined_call_operand.hbm [shape: f32[128,128], index: 10, kind: input, shape index: {}]
  %s11 = inlined_call_operand.hbm [shape: f32[128,128], index: 11, kind: input, shape index: {}]
  %s12 = inlined_call_operand.hbm [shape: f32[256,128], index: 12, kind: input, shape index: {}]
  %s13 = inlined_call_operand.vmem [shape: f32[1,128], index: 13, kind: input, shape index: {}]
  %s14 = inlined_call_operand.hbm [shape: f32[2,8,128], index: 14, kind: output, shape index: {}]
  %s15 = sld [smem:[#allocation0]]
  $region121: #{tpu_custom_call.1} parent=0
    _
  %s17 = ssub.s32 1, %s15
  %s18 = scalar_select 0, %s17, %s15
  %20 = dma.hbm_to_smem %s0, 16, [#allocation3], [#allocation2]
  %21 = dma.done [#allocation2], 16
  %22 = sfence
  $region1: #{tpu_custom_call.1} parent=0
    #allocation4 [shape = 'u8[8192]{0}', space=vmem, size = 0x2000, scoped, tag = 'input window, operand 1']
    #allocation5 [shape = 's32[2]{0}', space=sflag, size = 0x8, scoped, tag = 'scoped memory for tpu_custom_call.1']
    #allocation6 [shape = 's32[2]{0}', space=sflag, size = 0x8, scoped, tag = 'scoped memory for tpu_custom_call.1']
    #allocation7 [shape = 'u8[4096]{0}', space=vmem, size = 0x1000, scoped, tag = 'input window, operand 2, single buffered']
    #allocation8 [shape = 's32[1]{0}', space=sflag, size = 0x4, scoped, tag = 'scoped memory for tpu_custom_call.1']
    #allocation9 [shape = 'u8[65536]{0}', space=vmem, size = 0x10000, scoped, tag = 'input window, operand 3, single buffered']
    #allocation10 [shape = 'u8[196608]{0}', space=vmem, size = 0x30000, scoped, tag = 'input window, operand 5, single buffered']
    #allocation11 [shape = 's32[1]{0}', space=sflag, size = 0x4, scoped, tag = 'scoped memory for tpu_custom_call.1']
    #allocation12 [shape = 'u8[65536]{0}', space=vmem, size = 0x10000, scoped, tag = 'input window, operand 7, single buffered']
    #allocation13 [shape = 'u8[131072]{0}', space=vmem, size = 0x20000, scoped, tag = 'input window, operand 9, single buffered']
    #allocation14 [shape = 's32[1]{0}', space=sflag, size = 0x4, scoped, tag = 'scoped memory for tpu_custom_call.1']
    #allocation15 [shape = 'u8[65536]{0}', space=vmem, size = 0x10000, scoped, tag = 'input window, operand 10, single buffered']
    #allocation16 [shape = 'u8[65536]{0}', space=vmem, size = 0x10000, scoped, tag = 'input window, operand 11, single buffered']
    #allocation17 [shape = 's32[1]{0}', space=sflag, size = 0x4, scoped, tag = 'scoped memory for tpu_custom_call.1']
    #allocation18 [shape = 'u8[131072]{0}', space=vmem, size = 0x20000, scoped, tag = 'input window, operand 12, single buffered']
    #allocation19 [shape = 'u8[8192]{0}', space=vmem, size = 0x2000, scoped, tag = 'output window, operand 0']
    %23 = vsyncpa [#allocation5], 0
    %s24 = scalar_lea.sflag [#allocation5], 1
    %25 = vsyncpa %s24, 0
    %26 = vsyncpa [#allocation8], 0
    %27 = vsyncpa [#allocation11], 0
    %28 = vsyncpa [#allocation14], 0
    %29 = vsyncpa [#allocation17], 0
    %30 = vsyncpa [#allocation6], 0
    %s31 = scalar_lea.sflag [#allocation6], 1
    %32 = vsyncpa %s31, 0
    loop: start=0, step=1, limit=4
    $region2: #{tpu_custom_call.1} parent=1 // loop_pre_header
      _
    $region3: #{tpu_custom_call.1} parent=1 // loop_header
      %s34 = sphi 0, %s38
      %p35 = scmp.ge.s32.totalorder %s34, 4
      %s44 = sphi 0, %s46
      %s47 = sphi 0, %s44
      %s48 = sphi 0, %s47
      %s64 = sphi 0, %s48
      %s68 = sphi 0, %s68
      %s70 = sphi 0, %s68
      %s71 = sphi 0, %s70
      %s85 = sphi 0, %s71
      %s89 = sphi 0, %s89
      %s91 = sphi 0, %s89
      %s92 = sphi 0, %s91
      %s106 = sphi 0, %s92
      %s110 = sphi 0, %s110
      %s112 = sphi 0, %s110
      %s113 = sphi 0, %s112
      %s127 = sphi 0, %s113
      %s131 = sphi 0, %s131
      %s133 = sphi 0, %s131
      %s134 = sphi 0, %s133
      %s148 = sphi 0, %s134
      %s152 = sphi 0, %s152
      %s154 = sphi 0, %s152
      %s155 = sphi 0, %s154
      %s169 = sphi 0, %s155
      %s173 = sphi 0, %s173
      %s175 = sphi 0, %s173
      %s176 = sphi 0, %s175
      %s190 = sphi 0, %s176
      %s194 = sphi 0, %s194
      %s196 = sphi 0, %s194
      %s197 = sphi 0, %s196
      %s211 = sphi 0, %s197
      %s215 = sphi 0, %s215
      %s217 = sphi 0, %s215
      %s218 = sphi 0, %s217
      %s232 = sphi 0, %s218
      %s236 = sphi 0, %s236
      %s238 = sphi 0, %s236
      %s239 = sphi 0, %s238
      %s253 = sphi 0, %s239
      %s257 = sphi 0, %s257
      %s259 = sphi 0, %s257
      %s260 = sphi 0, %s259
      %s274 = sphi 0, %s260
      %s278 = sphi 0, %s278
      %s280 = sphi 0, %s278
      %s281 = sphi 0, %s280
      %s295 = sphi 0, %s281
      %s299 = sphi 0, %s299
      %s301 = sphi 0, %s299
      %s302 = sphi 0, %s301
      %s316 = sphi 0, %s302
      %s322 = sphi 0, %s324
      %s325 = sphi 0, %s322
      %s326 = sphi 0, %s325
      %s342 = sphi 0, %s326
    $region4: #{tpu_custom_call.1} parent=1 // loop_header_branch
      %37 = sbr.rel (%p35) target = $region8
    $region5: #{tpu_custom_call.1} parent=1 // loop_body
      %s39 = ssub.s32 %s34, 1
      %s40 = ssub.s32 %s34, 2
      %s41 = sadd.s32 %s34, 1
      %s42 = ssub.s32 %s34, %s41
      %p43 = scmp.eq.s32.totalorder %s42, 0
      %s45 = sadd.s32 %s44, 1
      %s46 = scalar_select %p43, %s44, %s45
      %p49 = pneg %p43
      %p50 = scmp.eq.s32.totalorder %s34, 1
      %p51 = por %p49, %p50
      %p52 = scmp.ne.s32.totalorder %s44, %s47
      %p53 = scmp.eq.s32.totalorder %s34, 0
      %p54 = por %p52, %p53
      %p55 = scmp.ne.s32.totalorder %s44, %s47
      %p56 = scmp.eq.s32.totalorder %s39, 1
      %p57 = por %p55, %p56
      %p58 = scmp.ne.s32.totalorder %s47, %s48
      %p59 = scmp.eq.s32.totalorder %s39, 0
      %p60 = por %p58, %p59
      %p61 = scmp.ne.s32.totalorder %s47, %s48
      %p62 = scmp.eq.s32.totalorder %s40, 1
      %p63 = por %p61, %p62
      %p65 = scmp.ne.s32.totalorder %s48, %s64
      %p66 = scmp.eq.s32.totalorder %s40, 0
      %p67 = por %p65, %p66
      %s69 = sadd.s32 %s68, 1
      %p72 = scmp.eq.s32.totalorder %s34, 1
      %p73 = scmp.ne.s32.totalorder %s68, %s70
      %p74 = scmp.eq.s32.totalorder %s34, 0
      %p75 = por %p73, %p74
      %p76 = scmp.ne.s32.totalorder %s68, %s70
      %p77 = scmp.eq.s32.totalorder %s39, 1
      %p78 = por %p76, %p77
      %p79 = scmp.ne.s32.totalorder %s70, %s71
      %p80 = scmp.eq.s32.totalorder %s39, 0
      %p81 = por %p79, %p80
      %p82 = scmp.ne.s32.totalorder %s70, %s71
      %p83 = scmp.eq.s32.totalorder %s40, 1
      %p84 = por %p82, %p83
      %p86 = scmp.ne.s32.totalorder %s71, %s85
      %p87 = scmp.eq.s32.totalorder %s40, 0
      %p88 = por %p86, %p87
      %s90 = sadd.s32 %s89, 1
      %p93 = scmp.eq.s32.totalorder %s34, 1
      %p94 = scmp.ne.s32.totalorder %s89, %s91
      %p95 = scmp.eq.s32.totalorder %s34, 0
      %p96 = por %p94, %p95
      %p97 = scmp.ne.s32.totalorder %s89, %s91
      %p98 = scmp.eq.s32.totalorder %s39, 1
      %p99 = por %p97, %p98
      %p100 = scmp.ne.s32.totalorder %s91, %s92
      %p101 = scmp.eq.s32.totalorder %s39, 0
      %p102 = por %p100, %p101
      %p103 = scmp.ne.s32.totalorder %s91, %s92
      %p104 = scmp.eq.s32.totalorder %s40, 1
      %p105 = por %p103, %p104
      %p107 = scmp.ne.s32.totalorder %s92, %s106
      %p108 = scmp.eq.s32.totalorder %s40, 0
      %p109 = por %p107, %p108
      %s111 = sadd.s32 %s110, 1
      %p114 = scmp.eq.s32.totalorder %s34, 1
      %p115 = scmp.ne.s32.totalorder %s110, %s112
      %p116 = scmp.eq.s32.totalorder %s34, 0
      %p117 = por %p115, %p116
      %p118 = scmp.ne.s32.totalorder %s110, %s112
      %p119 = scmp.eq.s32.totalorder %s39, 1
      %p120 = por %p118, %p119
      %p121 = scmp.ne.s32.totalorder %s112, %s113
      %p122 = scmp.eq.s32.totalorder %s39, 0
      %p123 = por %p121, %p122
      %p124 = scmp.ne.s32.totalorder %s112, %s113
      %p125 = scmp.eq.s32.totalorder %s40, 1
      %p126 = por %p124, %p125
      %p128 = scmp.ne.s32.totalorder %s113, %s127
      %p129 = scmp.eq.s32.totalorder %s40, 0
      %p130 = por %p128, %p129
      %s132 = sadd.s32 %s131, 1
      %p135 = scmp.eq.s32.totalorder %s34, 1
      %p136 = scmp.ne.s32.totalorder %s131, %s133
      %p137 = scmp.eq.s32.totalorder %s34, 0
      %p138 = por %p136, %p137
      %p139 = scmp.ne.s32.totalorder %s131, %s133
      %p140 = scmp.eq.s32.totalorder %s39, 1
      %p141 = por %p139, %p140
      %p142 = scmp.ne.s32.totalorder %s133, %s134
      %p143 = scmp.eq.s32.totalorder %s39, 0
      %p144 = por %p142, %p143
      %p145 = scmp.ne.s32.totalorder %s133, %s134
      %p146 = scmp.eq.s32.totalorder %s40, 1
      %p147 = por %p145, %p146
      %p149 = scmp.ne.s32.totalorder %s134, %s148
      %p150 = scmp.eq.s32.totalorder %s40, 0
      %p151 = por %p149, %p150
      %s153 = sadd.s32 %s152, 1
      %p156 = scmp.eq.s32.totalorder %s34, 1
      %p157 = scmp.ne.s32.totalorder %s152, %s154
      %p158 = scmp.eq.s32.totalorder %s34, 0
      %p159 = por %p157, %p158
      %p160 = scmp.ne.s32.totalorder %s152, %s154
      %p161 = scmp.eq.s32.totalorder %s39, 1
      %p162 = por %p160, %p161
      %p163 = scmp.ne.s32.totalorder %s154, %s155
      %p164 = scmp.eq.s32.totalorder %s39, 0
      %p165 = por %p163, %p164
      %p166 = scmp.ne.s32.totalorder %s154, %s155
      %p167 = scmp.eq.s32.totalorder %s40, 1
      %p168 = por %p166, %p167
      %p170 = scmp.ne.s32.totalorder %s155, %s169
      %p171 = scmp.eq.s32.totalorder %s40, 0
      %p172 = por %p170, %p171
      %s174 = sadd.s32 %s173, 1
      %p177 = scmp.eq.s32.totalorder %s34, 1
      %p178 = scmp.ne.s32.totalorder %s173, %s175
      %p179 = scmp.eq.s32.totalorder %s34, 0
      %p180 = por %p178, %p179
      %p181 = scmp.ne.s32.totalorder %s173, %s175
      %p182 = scmp.eq.s32.totalorder %s39, 1
      %p183 = por %p181, %p182
      %p184 = scmp.ne.s32.totalorder %s175, %s176
      %p185 = scmp.eq.s32.totalorder %s39, 0
      %p186 = por %p184, %p185
      %p187 = scmp.ne.s32.totalorder %s175, %s176
      %p188 = scmp.eq.s32.totalorder %s40, 1
      %p189 = por %p187, %p188
      %p191 = scmp.ne.s32.totalorder %s176, %s190
      %p192 = scmp.eq.s32.totalorder %s40, 0
      %p193 = por %p191, %p192
      %s195 = sadd.s32 %s194, 1
      %p198 = scmp.eq.s32.totalorder %s34, 1
      %p199 = scmp.ne.s32.totalorder %s194, %s196
      %p200 = scmp.eq.s32.totalorder %s34, 0
      %p201 = por %p199, %p200
      %p202 = scmp.ne.s32.totalorder %s194, %s196
      %p203 = scmp.eq.s32.totalorder %s39, 1
      %p204 = por %p202, %p203
      %p205 = scmp.ne.s32.totalorder %s196, %s197
      %p206 = scmp.eq.s32.totalorder %s39, 0
      %p207 = por %p205, %p206
      %p208 = scmp.ne.s32.totalorder %s196, %s197
      %p209 = scmp.eq.s32.totalorder %s40, 1
      %p210 = por %p208, %p209
      %p212 = scmp.ne.s32.totalorder %s197, %s211
      %p213 = scmp.eq.s32.totalorder %s40, 0
      %p214 = por %p212, %p213
      %s216 = sadd.s32 %s215, 1
      %p219 = scmp.eq.s32.totalorder %s34, 1
      %p220 = scmp.ne.s32.totalorder %s215, %s217
      %p221 = scmp.eq.s32.totalorder %s34, 0
      %p222 = por %p220, %p221
      %p223 = scmp.ne.s32.totalorder %s215, %s217
      %p224 = scmp.eq.s32.totalorder %s39, 1
      %p225 = por %p223, %p224
      %p226 = scmp.ne.s32.totalorder %s217, %s218
      %p227 = scmp.eq.s32.totalorder %s39, 0
      %p228 = por %p226, %p227
      %p229 = scmp.ne.s32.totalorder %s217, %s218
      %p230 = scmp.eq.s32.totalorder %s40, 1
      %p231 = por %p229, %p230
      %p233 = scmp.ne.s32.totalorder %s218, %s232
      %p234 = scmp.eq.s32.totalorder %s40, 0
      %p235 = por %p233, %p234
      %s237 = sadd.s32 %s236, 1
      %p240 = scmp.eq.s32.totalorder %s34, 1
      %p241 = scmp.ne.s32.totalorder %s236, %s238
      %p242 = scmp.eq.s32.totalorder %s34, 0
      %p243 = por %p241, %p242
      %p244 = scmp.ne.s32.totalorder %s236, %s238
      %p245 = scmp.eq.s32.totalorder %s39, 1
      %p246 = por %p244, %p245
      %p247 = scmp.ne.s32.totalorder %s238, %s239
      %p248 = scmp.eq.s32.totalorder %s39, 0
      %p249 = por %p247, %p248
      %p250 = scmp.ne.s32.totalorder %s238, %s239
      %p251 = scmp.eq.s32.totalorder %s40, 1
      %p252 = por %p250, %p251
      %p254 = scmp.ne.s32.totalorder %s239, %s253
      %p255 = scmp.eq.s32.totalorder %s40, 0
      %p256 = por %p254, %p255
      %s258 = sadd.s32 %s257, 1
      %p261 = scmp.eq.s32.totalorder %s34, 1
      %p262 = scmp.ne.s32.totalorder %s257, %s259
      %p263 = scmp.eq.s32.totalorder %s34, 0
      %p264 = por %p262, %p263
      %p265 = scmp.ne.s32.totalorder %s257, %s259
      %p266 = scmp.eq.s32.totalorder %s39, 1
      %p267 = por %p265, %p266
      %p268 = scmp.ne.s32.totalorder %s259, %s260
      %p269 = scmp.eq.s32.totalorder %s39, 0
      %p270 = por %p268, %p269
      %p271 = scmp.ne.s32.totalorder %s259, %s260
      %p272 = scmp.eq.s32.totalorder %s40, 1
      %p273 = por %p271, %p272
      %p275 = scmp.ne.s32.totalorder %s260, %s274
      %p276 = scmp.eq.s32.totalorder %s40, 0
      %p277 = por %p275, %p276
      %s279 = sadd.s32 %s278, 1
      %p282 = scmp.eq.s32.totalorder %s34, 1
      %p283 = scmp.ne.s32.totalorder %s278, %s280
      %p284 = scmp.eq.s32.totalorder %s34, 0
      %p285 = por %p283, %p284
      %p286 = scmp.ne.s32.totalorder %s278, %s280
      %p287 = scmp.eq.s32.totalorder %s39, 1
      %p288 = por %p286, %p287
      %p289 = scmp.ne.s32.totalorder %s280, %s281
      %p290 = scmp.eq.s32.totalorder %s39, 0
      %p291 = por %p289, %p290
      %p292 = scmp.ne.s32.totalorder %s280, %s281
      %p293 = scmp.eq.s32.totalorder %s40, 1
      %p294 = por %p292, %p293
      %p296 = scmp.ne.s32.totalorder %s281, %s295
      %p297 = scmp.eq.s32.totalorder %s40, 0
      %p298 = por %p296, %p297
      %s300 = sadd.s32 %s299, 1
      %p303 = scmp.eq.s32.totalorder %s34, 1
      %p304 = scmp.ne.s32.totalorder %s299, %s301
      %p305 = scmp.eq.s32.totalorder %s34, 0
      %p306 = por %p304, %p305
      %p307 = scmp.ne.s32.totalorder %s299, %s301
      %p308 = scmp.eq.s32.totalorder %s39, 1
      %p309 = por %p307, %p308
      %p310 = scmp.ne.s32.totalorder %s301, %s302
      %p311 = scmp.eq.s32.totalorder %s39, 0
      %p312 = por %p310, %p311
      %p313 = scmp.ne.s32.totalorder %s301, %s302
      %p314 = scmp.eq.s32.totalorder %s40, 1
      %p315 = por %p313, %p314
      %p317 = scmp.ne.s32.totalorder %s302, %s316
      %p318 = scmp.eq.s32.totalorder %s40, 0
      %p319 = por %p317, %p318
      %s320 = ssub.s32 %s34, %s41
      %p321 = scmp.eq.s32.totalorder %s320, 0
      %s323 = sadd.s32 %s322, 1
      %s324 = scalar_select %p321, %s322, %s323
      %p327 = pneg %p321
      %p328 = scmp.eq.s32.totalorder %s34, 1
      %p329 = por %p327, %p328
      %p330 = scmp.ne.s32.totalorder %s322, %s325
      %p331 = scmp.eq.s32.totalorder %s34, 0
      %p332 = por %p330, %p331
      %p333 = scmp.ne.s32.totalorder %s322, %s325
      %p334 = scmp.eq.s32.totalorder %s39, 1
      %p335 = por %p333, %p334
      %p336 = scmp.ne.s32.totalorder %s325, %s326
      %p337 = scmp.eq.s32.totalorder %s39, 0
      %p338 = por %p336, %p337
      %p339 = scmp.ne.s32.totalorder %s325, %s326
      %p340 = scmp.eq.s32.totalorder %s40, 1
      %p341 = por %p339, %p340
      %p343 = scmp.ne.s32.totalorder %s326, %s342
      %p344 = scmp.eq.s32.totalorder %s40, 0
      %p345 = por %p343, %p344
      %p346 = scmp.le.s32.totalorder 1, %s34
      %p347 = scmp.lt.s32.totalorder %s34, 3
      %p348 = pnand %p346, %p347
      %p349 = pneg %p348
      // Predicated region
      $region9: #{tpu_custom_call.1} parent=5 // pred_check
        _
      $region10: #{tpu_custom_call.1} parent=5 // pred_check_branch
        %351 = sbr.rel (%p348) target = $region12
      $region11: #{tpu_custom_call.1} parent=5 // pred_region
        %s352 = ssub.s32 %s34, 1
        // Predicated region
        $region13: #{tpu_custom_call.1} parent=11 // pred_check
          %p353 = pneg %p81
        $region14: #{tpu_custom_call.1} parent=11 // pred_check_branch
          %355 = sbr.rel (%p353) target = $region16
        $region15: #{tpu_custom_call.1} parent=11 // pred_region
          %s357 = ssub.s32 128, 128
          %358 = vsyncadd [#allocation8], %s357
          %s360 = sshll.u32 [#allocation7], 4
          %s361 = int_to_ptr.vmem [resolvable:$true] %s360
          %363 = dma.hbm_to_vmem [thread:$0]  %s2, 128, %s361, [#allocation8]
        $region16: #{tpu_custom_call.1} parent=11 // pred_fallthru
          _
        // Predicated region
        $region17: #{tpu_custom_call.1} parent=11 // pred_check
          %p364 = pneg %p102
        $region18: #{tpu_custom_call.1} parent=11 // pred_check_branch
          %366 = sbr.rel (%p364) target = $region20
        $region19: #{tpu_custom_call.1} parent=11 // pred_region
          %s368 = ssub.s32 2048, 2048
          %369 = vsyncadd [#allocation8], %s368
          %s370 = sshll.u32 [#allocation9], 4
          %s371 = int_to_ptr.vmem [resolvable:$true] %s370
          %376 = dma.hbm_to_vmem [thread:$0]  %s3, 2048, %s371, [#allocation8], 128, 128, 8
        $region20: #{tpu_custom_call.1} parent=11 // pred_fallthru
          _
        // Predicated region
        $region21: #{tpu_custom_call.1} parent=11 // pred_check
          %p377 = pneg %p123
        $region22: #{tpu_custom_call.1} parent=11 // pred_check_branch
          %379 = sbr.rel (%p377) target = $region24
        $region23: #{tpu_custom_call.1} parent=11 // pred_region
          _
        $region24: #{tpu_custom_call.1} parent=11 // pred_fallthru
          _
        // Predicated region
        $region25: #{tpu_custom_call.1} parent=11 // pred_check
          %p380 = pneg %p144
        $region26: #{tpu_custom_call.1} parent=11 // pred_check_branch
          %382 = sbr.rel (%p380) target = $region28
        $region27: #{tpu_custom_call.1} parent=11 // pred_region
          %s384 = ssub.s32 6144, 6144
          %385 = vsyncadd [#allocation11], %s384
          %s386 = sshll.u32 [#allocation10], 4
          %s387 = int_to_ptr.vmem [resolvable:$true] %s386
          %392 = dma.hbm_to_vmem [thread:$0]  %s5, 6144, %s387, [#allocation11], 384, 384, 24
        $region28: #{tpu_custom_call.1} parent=11 // pred_fallthru
          _
        // Predicated region
        $region29: #{tpu_custom_call.1} parent=11 // pred_check
          %p393 = pneg %p165
        $region30: #{tpu_custom_call.1} parent=11 // pred_check_branch
          %395 = sbr.rel (%p393) target = $region32
        $region31: #{tpu_custom_call.1} parent=11 // pred_region
          _
        $region32: #{tpu_custom_call.1} parent=11 // pred_fallthru
          _
        // Predicated region
        $region33: #{tpu_custom_call.1} parent=11 // pred_check
          %p396 = pneg %p186
        $region34: #{tpu_custom_call.1} parent=11 // pred_check_branch
          %398 = sbr.rel (%p396) target = $region36
        $region35: #{tpu_custom_call.1} parent=11 // pred_region
          %s400 = ssub.s32 2048, 2048
          %401 = vsyncadd [#allocation11], %s400
          %s402 = sshll.u32 [#allocation12], 4
          %s403 = int_to_ptr.vmem [resolvable:$true] %s402
          %408 = dma.hbm_to_vmem [thread:$0]  %s7, 2048, %s403, [#allocation11], 128, 128, 8
        $region36: #{tpu_custom_call.1} parent=11 // pred_fallthru
          _
        // Predicated region
        $region37: #{tpu_custom_call.1} parent=11 // pred_check
          %p409 = pneg %p207
        $region38: #{tpu_custom_call.1} parent=11 // pred_check_branch
          %411 = sbr.rel (%p409) target = $region40
        $region39: #{tpu_custom_call.1} parent=11 // pred_region
          _
        $region40: #{tpu_custom_call.1} parent=11 // pred_fallthru
          _
        // Predicated region
        $region41: #{tpu_custom_call.1} parent=11 // pred_check
          %p412 = pneg %p228
        $region42: #{tpu_custom_call.1} parent=11 // pred_check_branch
          %414 = sbr.rel (%p412) target = $region44
        $region43: #{tpu_custom_call.1} parent=11 // pred_region
          %s416 = ssub.s32 4096, 4096
          %417 = vsyncadd [#allocation14], %s416
          %s418 = sshll.u32 [#allocation13], 4
          %s419 = int_to_ptr.vmem [resolvable:$true] %s418
          %424 = dma.hbm_to_vmem [thread:$0]  %s9, 4096, %s419, [#allocation14], 256, 256, 16
        $region44: #{tpu_custom_call.1} parent=11 // pred_fallthru
          _
        // Predicated region
        $region45: #{tpu_custom_call.1} parent=11 // pred_check
          %p425 = pneg %p249
        $region46: #{tpu_custom_call.1} parent=11 // pred_check_branch
          %427 = sbr.rel (%p425) target = $region48
        $region47: #{tpu_custom_call.1} parent=11 // pred_region
          %s429 = ssub.s32 2048, 2048
          %430 = vsyncadd [#allocation14], %s429
          %s431 = sshll.u32 [#allocation15], 4
          %s432 = int_to_ptr.vmem [resolvable:$true] %s431
          %437 = dma.hbm_to_vmem [thread:$0]  %s10, 2048, %s432, [#allocation14], 128, 128, 8
        $region48: #{tpu_custom_call.1} parent=11 // pred_fallthru
          _
        // Predicated region
        $region49: #{tpu_custom_call.1} parent=11 // pred_check
          %p438 = pneg %p270
        $region50: #{tpu_custom_call.1} parent=11 // pred_check_branch
          %440 = sbr.rel (%p438) target = $region52
        $region51: #{tpu_custom_call.1} parent=11 // pred_region
          %s442 = ssub.s32 2048, 2048
          %443 = vsyncadd [#allocation17], %s442
          %s444 = sshll.u32 [#allocation16], 4
          %s445 = int_to_ptr.vmem [resolvable:$true] %s444
          %450 = dma.hbm_to_vmem [thread:$0]  %s11, 2048, %s445, [#allocation17], 128, 128, 8
        $region52: #{tpu_custom_call.1} parent=11 // pred_fallthru
          _
        // Predicated region
        $region53: #{tpu_custom_call.1} parent=11 // pred_check
          %p451 = pneg %p291
        $region54: #{tpu_custom_call.1} parent=11 // pred_check_branch
          %453 = sbr.rel (%p451) target = $region56
        $region55: #{tpu_custom_call.1} parent=11 // pred_region
          %s455 = ssub.s32 4096, 4096
          %456 = vsyncadd [#allocation17], %s455
          %s457 = sshll.u32 [#allocation18], 4
          %s458 = int_to_ptr.vmem [resolvable:$true] %s457
          %463 = dma.hbm_to_vmem [thread:$0]  %s12, 4096, %s458, [#allocation17], 128, 128, 8
        $region56: #{tpu_custom_call.1} parent=11 // pred_fallthru
          _
        // Predicated region
        $region57: #{tpu_custom_call.1} parent=11 // pred_check
          %p464 = pneg %p312
        $region58: #{tpu_custom_call.1} parent=11 // pred_check_branch
          %466 = sbr.rel (%p464) target = $region60
        $region59: #{tpu_custom_call.1} parent=11 // pred_region
          _
        $region60: #{tpu_custom_call.1} parent=11 // pred_fallthru
          _
      $region12: #{tpu_custom_call.1} parent=5 // pred_fallthru
        _
      %p467 = scmp.lt.s32.totalorder %s34, 2
      // Predicated region
      $region61: #{tpu_custom_call.1} parent=5 // pred_check
        %p468 = pneg %p467
      $region62: #{tpu_custom_call.1} parent=5 // pred_check_branch
        %470 = sbr.rel (%p468) target = $region64
      $region63: #{tpu_custom_call.1} parent=5 // pred_region
        // Predicated region
        $region65: #{tpu_custom_call.1} parent=63 // pred_check
          %p471 = pneg %p54
        $region66: #{tpu_custom_call.1} parent=63 // pred_check_branch
          %473 = sbr.rel (%p471) target = $region68
        $region67: #{tpu_custom_call.1} parent=63 // pred_region
          %s474 = sand.u32 %s44, 1
          %s475 = scalar_lea.sflag [#allocation5], %s474
          %s476 = sand.u32 %s44, 1
          %s477 = smul.addr %s476, 8
          %s478 = scalar_lea.vmem [#allocation4], %s477
          %s480 = ssub.s32 128, 128
          %481 = vsyncadd %s475, %s480
          %s482 = smul.addr %s34, 128
          %s483 = scalar_lea.hbm %s1, %s482
          %s485 = sshll.u32 %s478, 4
          %s486 = int_to_ptr.vmem [resolvable:$true] %s485
          %488 = dma.hbm_to_vmem [thread:$0]  %s483, 128, %s486, %s475
        $region68: #{tpu_custom_call.1} parent=63 // pred_fallthru
          _
      $region64: #{tpu_custom_call.1} parent=5 // pred_fallthru
        _
      %p489 = scmp.le.s32.totalorder 1, %s34
      %p490 = scmp.lt.s32.totalorder %s34, 3
      %p491 = pnand %p489, %p490
      %p492 = pneg %p491
      // Predicated region
      $region69: #{tpu_custom_call.1} parent=5 // pred_check
        _
      $region70: #{tpu_custom_call.1} parent=5 // pred_check_branch
        %494 = sbr.rel (%p491) target = $region72
      $region71: #{tpu_custom_call.1} parent=5 // pred_region
        %s495 = ssub.s32 %s34, 1
        %s496 = sand.u32 %s47, 1
        %s497 = scalar_lea.sflag [#allocation5], %s496
        %s498 = sand.u32 %s47, 1
        %s499 = smul.addr %s498, 8
        %s500 = scalar_lea.vmem [#allocation4], %s499
        // Predicated region
        $region73: #{tpu_custom_call.1} parent=71 // pred_check
          %p501 = pneg %p60
        $region74: #{tpu_custom_call.1} parent=71 // pred_check_branch
          %503 = sbr.rel (%p501) target = $region76
        $region75: #{tpu_custom_call.1} parent=71 // pred_region
          %504 = dma.done %s497, 128
        $region76: #{tpu_custom_call.1} parent=71 // pred_fallthru
          _
        // Predicated region
        $region77: #{tpu_custom_call.1} parent=71 // pred_check
          %p505 = pneg %p81
        $region78: #{tpu_custom_call.1} parent=71 // pred_check_branch
          %507 = sbr.rel (%p505) target = $region80
        $region79: #{tpu_custom_call.1} parent=71 // pred_region
          %508 = dma.done [#allocation8], 128
        $region80: #{tpu_custom_call.1} parent=71 // pred_fallthru
          _
        // Predicated region
        $region81: #{tpu_custom_call.1} parent=71 // pred_check
          %p509 = pneg %p102
        $region82: #{tpu_custom_call.1} parent=71 // pred_check_branch
          %511 = sbr.rel (%p509) target = $region84
        $region83: #{tpu_custom_call.1} parent=71 // pred_region
          %512 = dma.done [#allocation8], 2048
        $region84: #{tpu_custom_call.1} parent=71 // pred_fallthru
          _
        // Predicated region
        $region85: #{tpu_custom_call.1} parent=71 // pred_check
          %p513 = pneg %p144
        $region86: #{tpu_custom_call.1} parent=71 // pred_check_branch
          %515 = sbr.rel (%p513) target = $region88
        $region87: #{tpu_custom_call.1} parent=71 // pred_region
          %516 = dma.done [#allocation11], 6144
        $region88: #{tpu_custom_call.1} parent=71 // pred_fallthru
          _
        // Predicated region
        $region89: #{tpu_custom_call.1} parent=71 // pred_check
          %p517 = pneg %p186
        $region90: #{tpu_custom_call.1} parent=71 // pred_check_branch
          %519 = sbr.rel (%p517) target = $region92
        $region91: #{tpu_custom_call.1} parent=71 // pred_region
          %520 = dma.done [#allocation11], 2048
        $region92: #{tpu_custom_call.1} parent=71 // pred_fallthru
          _
        // Predicated region
        $region93: #{tpu_custom_call.1} parent=71 // pred_check
          %p521 = pneg %p228
        $region94: #{tpu_custom_call.1} parent=71 // pred_check_branch
          %523 = sbr.rel (%p521) target = $region96
        $region95: #{tpu_custom_call.1} parent=71 // pred_region
          %524 = dma.done [#allocation14], 4096
        $region96: #{tpu_custom_call.1} parent=71 // pred_fallthru
          _
        // Predicated region
        $region97: #{tpu_custom_call.1} parent=71 // pred_check
          %p525 = pneg %p249
        $region98: #{tpu_custom_call.1} parent=71 // pred_check_branch
          %527 = sbr.rel (%p525) target = $region100
        $region99: #{tpu_custom_call.1} parent=71 // pred_region
          %528 = dma.done [#allocation14], 2048
        $region100: #{tpu_custom_call.1} parent=71 // pred_fallthru
          _
        // Predicated region
        $region101: #{tpu_custom_call.1} parent=71 // pred_check
          %p529 = pneg %p270
        $region102: #{tpu_custom_call.1} parent=71 // pred_check_branch
          %531 = sbr.rel (%p529) target = $region104
        $region103: #{tpu_custom_call.1} parent=71 // pred_region
          %532 = dma.done [#allocation17], 2048
        $region104: #{tpu_custom_call.1} parent=71 // pred_fallthru
          _
        // Predicated region
        $region105: #{tpu_custom_call.1} parent=71 // pred_check
          %p533 = pneg %p291
        $region106: #{tpu_custom_call.1} parent=71 // pred_check_branch
          %535 = sbr.rel (%p533) target = $region108
        $region107: #{tpu_custom_call.1} parent=71 // pred_region
          %536 = dma.done [#allocation17], 4096
        $region108: #{tpu_custom_call.1} parent=71 // pred_fallthru
          _
        %s537 = sand.u32 %s47, 1
        %s538 = scalar_lea.sflag [#allocation5], %s537
        %s539 = sand.u32 %s47, 1
        %s540 = smul.addr %s539, 8
        %s541 = scalar_lea.vmem [#allocation4], %s540
        %p542 = pneg %p60
        %p543 = pneg %p57
        %p544 = pneg %p81
        %p545 = pneg %p78
        %p546 = pneg %p102
        %p547 = pneg %p99
        %p548 = pneg %p123
        %p549 = pneg %p120
        %p550 = pneg %p144
        %p551 = pneg %p141
        %p552 = pneg %p165
        %p553 = pneg %p162
        %p554 = pneg %p186
        %p555 = pneg %p183
        %p556 = pneg %p207
        %p557 = pneg %p204
        %p558 = pneg %p228
        %p559 = pneg %p225
        %p560 = pneg %p249
        %p561 = pneg %p246
        %p562 = pneg %p270
        %p563 = pneg %p267
        %p564 = pneg %p291
        %p565 = pneg %p288
        %p566 = pneg %p312
        %p567 = pneg %p309
        %p568 = pneg %p338
        %p569 = pneg %p335
        %s570 = sand.u32 %s325, 1
        %s571 = scalar_lea.sflag [#allocation6], %s570
        %s572 = sand.u32 %s325, 1
        %s573 = smul.addr %s572, 8
        %s574 = scalar_lea.vmem [#allocation19], %s573
        %v575 = vlaneseq
        %v576 = vshrl.u32 %v575, 7
        %v577 = vld [vmem:[%s500] sm:$0xff]
        %v578 = vld [vmem:[#allocation9] sm:$0xff]
        %v579 = vld [vmem:[#allocation9 + $0x8] sm:$0xff]
        %v580 = vld [vmem:[#allocation9 + $0x10] sm:$0xff]
        %v581 = vld [vmem:[#allocation9 + $0x18] sm:$0xff]
        %v582 = vld [vmem:[#allocation9 + $0x20] sm:$0xff]
        %v583 = vld [vmem:[#allocation9 + $0x28] sm:$0xff]
        %v584 = vld [vmem:[#allocation9 + $0x30] sm:$0xff]
        %v585 = vld [vmem:[#allocation9 + $0x38] sm:$0xff]
        %v586 = vld [vmem:[#allocation9 + $0x40] sm:$0xff]
        %v587 = vld [vmem:[#allocation9 + $0x48] sm:$0xff]
        %v588 = vld [vmem:[#allocation9 + $0x50] sm:$0xff]
        %v589 = vld [vmem:[#allocation9 + $0x58] sm:$0xff]
        %v590 = vld [vmem:[#allocation9 + $0x60] sm:$0xff]
        %v591 = vld [vmem:[#allocation9 + $0x68] sm:$0xff]
        %v592 = vld [vmem:[#allocation9 + $0x70] sm:$0xff]
        %v593 = vld [vmem:[#allocation9 + $0x78] sm:$0xff]
        %v594 = vld [vmem:[%s4] sm:$0x1]
        %v596 = vlaneseq
        %v597 = vshrl.u32 %v596, 7
        %v598 = vsub.s32 0, %v597
        %v599 = vrot.slane %v594, %v598
        %601 = vmatprep.subr.mxu0 0.0
        %602 = vmatpush1.msra.mxu0 %v578
        %603 = vmatprep.subr.mxu0 0.0
        %604 = vmatpush1.msra.mxu0 %v579
        %605 = vmatprep.subr.mxu0 0.0
        %606 = vmatpush1.msra.mxu0 %v580
        %607 = vmatprep.subr.mxu0 0.0
        %608 = vmatpush1.msra.mxu0 %v581
        %609 = vmatprep.subr.mxu0 0.0
        %610 = vmatpush1.msra.mxu0 %v582
        %611 = vmatprep.subr.mxu0 0.0
        %612 = vmatpush1.msra.mxu0 %v583
        %613 = vmatprep.subr.mxu0 0.0
        %614 = vmatpush1.msra.mxu0 %v584
        %615 = vmatprep.subr.mxu0 0.0
        %616 = vmatpush1.msra.mxu0 %v585
        %617 = vmatprep.subr.mxu0 0.0
        %618 = vmatpush1.msra.mxu0 %v586
        %619 = vmatprep.subr.mxu0 0.0
        %620 = vmatpush1.msra.mxu0 %v587
        %621 = vmatprep.subr.mxu0 0.0
        %622 = vmatpush1.msra.mxu0 %v588
        %623 = vmatprep.subr.mxu0 0.0
        %624 = vmatpush1.msra.mxu0 %v589
        %625 = vmatprep.subr.mxu0 0.0
        %626 = vmatpush1.msra.mxu0 %v590
        %627 = vmatprep.subr.mxu0 0.0
        %628 = vmatpush1.msra.mxu0 %v591
        %629 = vmatprep.subr.mxu0 0.0
        %630 = vmatpush1.msra.mxu0 %v592
        %631 = vmatprep.subr.mxu0 0.0
        %632 = vmatpush1.msra.mxu0 %v593
        %633 = vmatprep.subr.mxu0 0.0
        %634 = vmatpush1.msra.mxu0 0.0
        %635 = vmatprep.subr.mxu0 0.0
        %636 = vmatpush1.msra.mxu0 0.0
        %637 = vmatprep.subr.mxu0 0.0
        %638 = vmatpush1.msra.mxu0 0.0
        %639 = vmatprep.subr.mxu0 0.0
        %640 = vmatpush1.msra.mxu0 0.0
        %641 = vmatprep.subr.mxu0 0.0
        %642 = vmatpush1.msra.mxu0 0.0
        %643 = vmatprep.subr.mxu0 0.0
        %644 = vmatpush1.msra.mxu0 0.0
        %645 = vmatprep.subr.mxu0 0.0
        %646 = vmatpush1.msra.mxu0 0.0
        %647 = vmatprep.subr.mxu0 0.0
        %648 = vmatpush1.msra.mxu0 0.0
        %649 = vmatprep.subr.mxu0 0.0
        %650 = vmatpush1.msra.mxu0 0.0
        %651 = vmatprep.subr.mxu0 0.0
        %652 = vmatpush1.msra.mxu0 0.0
        %653 = vmatprep.subr.mxu0 0.0
        %654 = vmatpush1.msra.mxu0 0.0
        %655 = vmatprep.subr.mxu0 0.0
        %656 = vmatpush1.msra.mxu0 0.0
        %657 = vmatprep.subr.mxu0 0.0
        %658 = vmatpush1.msra.mxu0 0.0
        %659 = vmatprep.subr.mxu0 0.0
        %660 = vmatpush1.msra.mxu0 0.0
        %661 = vmatprep.subr.mxu0 0.0
        %662 = vmatpush1.msra.mxu0 0.0
        %663 = vmatprep.subr.mxu0 0.0
        %664 = vmatpush1.msra.mxu0 0.0
        %665 = vmatprep.mubr.f32.mxu0 0.0
        %666 = vmatmul.mubr.f32.gmra.mrb[0].mxu0 %v577
        %v667 = vpop.f32.mrb[0].mxu0
        %v668 = vadd.f32 %v599, %v667
        %v669 = vpop.f32.mrb[0].mxu0
        %670 = vdwg.mxu0
        %v671 = vld [vmem:[#allocation10] sm:$0xff]
        %v672 = vld [vmem:[#allocation10 + $0x8] sm:$0xff]
        %v673 = vld [vmem:[#allocation10 + $0x10] sm:$0xff]
        %v674 = vld [vmem:[#allocation10 + $0x18] sm:$0xff]
        %v675 = vld [vmem:[#allocation10 + $0x20] sm:$0xff]
        %v676 = vld [vmem:[#allocation10 + $0x28] sm:$0xff]
        %v677 = vld [vmem:[#allocation10 + $0x30] sm:$0xff]
        %v678 = vld [vmem:[#allocation10 + $0x38] sm:$0xff]
        %v679 = vld [vmem:[#allocation10 + $0x40] sm:$0xff]
        %v680 = vld [vmem:[#allocation10 + $0x48] sm:$0xff]
        %v681 = vld [vmem:[#allocation10 + $0x50] sm:$0xff]
        %v682 = vld [vmem:[#allocation10 + $0x58] sm:$0xff]
        %v683 = vld [vmem:[#allocation10 + $0x60] sm:$0xff]
        %v684 = vld [vmem:[#allocation10 + $0x68] sm:$0xff]
        %v685 = vld [vmem:[#allocation10 + $0x70] sm:$0xff]
        %v686 = vld [vmem:[#allocation10 + $0x78] sm:$0xff]
        %v687 = vld [vmem:[#allocation10 + $0x80] sm:$0xff]
        %v688 = vld [vmem:[#allocation10 + $0x88] sm:$0xff]
        %v689 = vld [vmem:[#allocation10 + $0x90] sm:$0xff]
        %v690 = vld [vmem:[#allocation10 + $0x98] sm:$0xff]
        %v691 = vld [vmem:[#allocation10 + $0xa0] sm:$0xff]
        %v692 = vld [vmem:[#allocation10 + $0xa8] sm:$0xff]
        %v693 = vld [vmem:[#allocation10 + $0xb0] sm:$0xff]
        %v694 = vld [vmem:[#allocation10 + $0xb8] sm:$0xff]
        %v695 = vld [vmem:[#allocation10 + $0xc0] sm:$0xff]
        %v696 = vld [vmem:[#allocation10 + $0xc8] sm:$0xff]
        %v697 = vld [vmem:[#allocation10 + $0xd0] sm:$0xff]
        %v698 = vld [vmem:[#allocation10 + $0xd8] sm:$0xff]
        %v699 = vld [vmem:[#allocation10 + $0xe0] sm:$0xff]
        %v700 = vld [vmem:[#allocation10 + $0xe8] sm:$0xff]
        %v701 = vld [vmem:[#allocation10 + $0xf0] sm:$0xff]
        %v702 = vld [vmem:[#allocation10 + $0xf8] sm:$0xff]
        %v703 = vld [vmem:[#allocation10 + $0x100] sm:$0xff]
        %v704 = vld [vmem:[#allocation10 + $0x108] sm:$0xff]
        %v705 = vld [vmem:[#allocation10 + $0x110] sm:$0xff]
        %v706 = vld [vmem:[#allocation10 + $0x118] sm:$0xff]
        %v707 = vld [vmem:[#allocation10 + $0x120] sm:$0xff]
        %v708 = vld [vmem:[#allocation10 + $0x128] sm:$0xff]
        %v709 = vld [vmem:[#allocation10 + $0x130] sm:$0xff]
        %v710 = vld [vmem:[#allocation10 + $0x138] sm:$0xff]
        %v711 = vld [vmem:[#allocation10 + $0x140] sm:$0xff]
        %v712 = vld [vmem:[#allocation10 + $0x148] sm:$0xff]
        %v713 = vld [vmem:[#allocation10 + $0x150] sm:$0xff]
        %v714 = vld [vmem:[#allocation10 + $0x158] sm:$0xff]
        %v715 = vld [vmem:[#allocation10 + $0x160] sm:$0xff]
        %v716 = vld [vmem:[#allocation10 + $0x168] sm:$0xff]
        %v717 = vld [vmem:[#allocation10 + $0x170] sm:$0xff]
        %v718 = vld [vmem:[#allocation10 + $0x178] sm:$0xff]
        %719 = vmatprep.subr.mxu0 %v672
        %720 = vmatpush1.msra.mxu0 %v671
        %721 = vmatprep.subr.mxu0 %v675
        %722 = vmatpush1.msra.mxu0 %v674
        %723 = vmatprep.subr.mxu0 %v678
        %724 = vmatpush1.msra.mxu0 %v677
        %725 = vmatprep.subr.mxu0 %v681
        %726 = vmatpush1.msra.mxu0 %v680
        %727 = vmatprep.subr.mxu0 %v684
        %728 = vmatpush1.msra.mxu0 %v683
        %729 = vmatprep.subr.mxu0 %v687
        %730 = vmatpush1.msra.mxu0 %v686
        %731 = vmatprep.subr.mxu0 %v690
        %732 = vmatpush1.msra.mxu0 %v689
        %733 = vmatprep.subr.mxu0 %v693
        %734 = vmatpush1.msra.mxu0 %v692
        %735 = vmatprep.subr.mxu0 %v696
        %736 = vmatpush1.msra.mxu0 %v695
        %737 = vmatprep.subr.mxu0 %v699
        %738 = vmatpush1.msra.mxu0 %v698
        %739 = vmatprep.subr.mxu0 %v702
        %740 = vmatpush1.msra.mxu0 %v701
        %741 = vmatprep.subr.mxu0 %v705
        %742 = vmatpush1.msra.mxu0 %v704
        %743 = vmatprep.subr.mxu0 %v708
        %744 = vmatpush1.msra.mxu0 %v707
        %745 = vmatprep.subr.mxu0 %v711
        %746 = vmatpush1.msra.mxu0 %v710
        %747 = vmatprep.subr.mxu0 %v714
        %748 = vmatpush1.msra.mxu0 %v713
        %749 = vmatprep.subr.mxu0 %v717
        %750 = vmatpush1.msra.mxu0 %v716
        %751 = vmatprep.subr.mxu0 0.0
        %752 = vmatpush1.msra.mxu0 0.0
        %753 = vmatprep.subr.mxu0 0.0
        %754 = vmatpush1.msra.mxu0 0.0
        %755 = vmatprep.subr.mxu0 0.0
        %756 = vmatpush1.msra.mxu0 0.0
        %757 = vmatprep.subr.mxu0 0.0
        %758 = vmatpush1.msra.mxu0 0.0
        %759 = vmatprep.subr.mxu0 0.0
        %760 = vmatpush1.msra.mxu0 0.0
        %761 = vmatprep.subr.mxu0 0.0
        %762 = vmatpush1.msra.mxu0 0.0
        %763 = vmatprep.subr.mxu0 0.0
        %764 = vmatpush1.msra.mxu0 0.0
        %765 = vmatprep.subr.mxu0 0.0
        %766 = vmatpush1.msra.mxu0 0.0
        %767 = vmatprep.subr.mxu0 0.0
        %768 = vmatpush1.msra.mxu0 0.0
        %769 = vmatprep.subr.mxu0 0.0
        %770 = vmatpush1.msra.mxu0 0.0
        %771 = vmatprep.subr.mxu0 0.0
        %772 = vmatpush1.msra.mxu0 0.0
        %773 = vmatprep.subr.mxu0 0.0
        %774 = vmatpush1.msra.mxu0 0.0
        %775 = vmatprep.subr.mxu0 0.0
        %776 = vmatpush1.msra.mxu0 0.0
        %777 = vmatprep.subr.mxu0 0.0
        %778 = vmatpush1.msra.mxu0 0.0
        %779 = vmatprep.subr.mxu0 0.0
        %780 = vmatpush1.msra.mxu0 0.0
        %781 = vmatprep.subr.mxu0 0.0
        %782 = vmatpush1.msra.mxu0 0.0
        %783 = vmatprep.mubr.f32.mxu0 0.0
        %784 = vmatmul.mubr.f32.gmra.mrb[0].mxu0 %v668
        %v785 = vpop.f32.mrb[0].mxu0
        %v786 = vadd.f32 0.0, %v785
        %v787 = vpop.f32.mrb[0].mxu0
        %v788 = vadd.f32 0.0, %v787
        %789 = vdwg.mxu0
        %790 = vmatprep.subr.mxu0 0.0
        %791 = vmatpush1.msra.mxu0 %v673
        %792 = vmatprep.subr.mxu0 0.0
        %793 = vmatpush1.msra.mxu0 %v676
        %794 = vmatprep.subr.mxu0 0.0
        %795 = vmatpush1.msra.mxu0 %v679
        %796 = vmatprep.subr.mxu0 0.0
        %797 = vmatpush1.msra.mxu0 %v682
        %798 = vmatprep.subr.mxu0 0.0
        %799 = vmatpush1.msra.mxu0 %v685
        %800 = vmatprep.subr.mxu0 0.0
        %801 = vmatpush1.msra.mxu0 %v688
        %802 = vmatprep.subr.mxu0 0.0
        %803 = vmatpush1.msra.mxu0 %v691
        %804 = vmatprep.subr.mxu0 0.0
        %805 = vmatpush1.msra.mxu0 %v694
        %806 = vmatprep.subr.mxu0 0.0
        %807 = vmatpush1.msra.mxu0 %v697
        %808 = vmatprep.subr.mxu0 0.0
        %809 = vmatpush1.msra.mxu0 %v700
        %810 = vmatprep.subr.mxu0 0.0
        %811 = vmatpush1.msra.mxu0 %v703
        %812 = vmatprep.subr.mxu0 0.0
        %813 = vmatpush1.msra.mxu0 %v706
        %814 = vmatprep.subr.mxu0 0.0
        %815 = vmatpush1.msra.mxu0 %v709
        %816 = vmatprep.subr.mxu0 0.0
        %817 = vmatpush1.msra.mxu0 %v712
        %818 = vmatprep.subr.mxu0 0.0
        %819 = vmatpush1.msra.mxu0 %v715
        %820 = vmatprep.subr.mxu0 0.0
        %821 = vmatpush1.msra.mxu0 %v718
        %822 = vmatprep.subr.mxu0 0.0
        %823 = vmatpush1.msra.mxu0 0.0
        %824 = vmatprep.subr.mxu0 0.0
        %825 = vmatpush1.msra.mxu0 0.0
        %826 = vmatprep.subr.mxu0 0.0
        %827 = vmatpush1.msra.mxu0 0.0
        %828 = vmatprep.subr.mxu0 0.0
        %829 = vmatpush1.msra.mxu0 0.0
        %830 = vmatprep.subr.mxu0 0.0
        %831 = vmatpush1.msra.mxu0 0.0
        %832 = vmatprep.subr.mxu0 0.0
        %833 = vmatpush1.msra.mxu0 0.0
        %834 = vmatprep.subr.mxu0 0.0
        %835 = vmatpush1.msra.mxu0 0.0
        %836 = vmatprep.subr.mxu0 0.0
        %837 = vmatpush1.msra.mxu0 0.0
        %838 = vmatprep.subr.mxu0 0.0
        %839 = vmatpush1.msra.mxu0 0.0
        %840 = vmatprep.subr.mxu0 0.0
        %841 = vmatpush1.msra.mxu0 0.0
        %842 = vmatprep.subr.mxu0 0.0
        %843 = vmatpush1.msra.mxu0 0.0
        %844 = vmatprep.subr.mxu0 0.0
        %845 = vmatpush1.msra.mxu0 0.0
        %846 = vmatprep.subr.mxu0 0.0
        %847 = vmatpush1.msra.mxu0 0.0
        %848 = vmatprep.subr.mxu0 0.0
        %849 = vmatpush1.msra.mxu0 0.0
        %850 = vmatprep.subr.mxu0 0.0
        %851 = vmatpush1.msra.mxu0 0.0
        %852 = vmatprep.subr.mxu0 0.0
        %853 = vmatpush1.msra.mxu0 0.0
        %854 = vmatprep.mubr.f32.mxu0 0.0
        %855 = vmatmul.mubr.f32.gmra.mrb[0].mxu0 %v668
        %v856 = vpop.f32.mrb[0].mxu0
        %v857 = vadd.f32 0.0, %v856
        %v858 = vpop.f32.mrb[0].mxu0
        %859 = vdwg.mxu0
        %v861 = vrot.slane %v786, 7
        %vm863 = vcmask 1040384
        %v864 = vsel %vm863, 0.0, %v861
        %v866 = vrot.slane %v857, 1
        %vm868 = vcmask 1046528
        %v869 = vsel %vm868, %v866, 0.0
        %vm870 = vcmp.gt.s32.totalorder %v576, 0
        %v871 = vsel %vm870, 1, 0
        %vm872 = vcmp.eq.s32.totalorder %v871, 1
        %v873 = vsel %vm872, %v864, 0.0
        %vm874 = vcmp.lt.s32.totalorder %v576, 7
        %v875 = vsel %vm874, 1, 0
        %vm876 = vcmp.eq.s32.totalorder %v875, 1
        %v877 = vsel %vm876, %v869, 0.0
        %v878 = vadd.f32 %v873, %v788
        %v879 = vadd.f32 %v878, %v877
        %v880 = vld [vmem:[%s6] sm:$0x1]
        %v882 = vlaneseq
        %v883 = vshrl.u32 %v882, 7
        %v884 = vsub.s32 0, %v883
        %v885 = vrot.slane %v880, %v884
        %v887 = vadd.f32 %v879, %v885
        %v888 = vmul.f32 %v887, 0.5
        %v889 = vmul.f32 %v887, 0.70710677
        %v890 = verf.f32.pop %v889
        %v891 = vadd.f32 %v890, 1.0
        %v892 = vmul.f32 %v888, %v891
        %v893 = vld [vmem:[#allocation12] sm:$0xff]
        %v894 = vld [vmem:[#allocation12 + $0x8] sm:$0xff]
        %v895 = vld [vmem:[#allocation12 + $0x10] sm:$0xff]
        %v896 = vld [vmem:[#allocation12 + $0x18] sm:$0xff]
        %v897 = vld [vmem:[#allocation12 + $0x20] sm:$0xff]
        %v898 = vld [vmem:[#allocation12 + $0x28] sm:$0xff]
        %v899 = vld [vmem:[#allocation12 + $0x30] sm:$0xff]
        %v900 = vld [vmem:[#allocation12 + $0x38] sm:$0xff]
        %v901 = vld [vmem:[#allocation12 + $0x40] sm:$0xff]
        %v902 = vld [vmem:[#allocation12 + $0x48] sm:$0xff]
        %v903 = vld [vmem:[#allocation12 + $0x50] sm:$0xff]
        %v904 = vld [vmem:[#allocation12 + $0x58] sm:$0xff]
        %v905 = vld [vmem:[#allocation12 + $0x60] sm:$0xff]
        %v906 = vld [vmem:[#allocation12 + $0x68] sm:$0xff]
        %v907 = vld [vmem:[#allocation12 + $0x70] sm:$0xff]
        %v908 = vld [vmem:[#allocation12 + $0x78] sm:$0xff]
        %v909 = vld [vmem:[%s8] sm:$0x1]
        %v911 = vlaneseq
        %v912 = vshrl.u32 %v911, 7
        %v913 = vsub.s32 0, %v912
        %v914 = vrot.slane %v909, %v913
        %916 = vmatprep.subr.mxu0 0.0
        %917 = vmatpush1.msra.mxu0 %v893
        %918 = vmatprep.subr.mxu0 0.0
        %919 = vmatpush1.msra.mxu0 %v894
        %920 = vmatprep.subr.mxu0 0.0
        %921 = vmatpush1.msra.mxu0 %v895
        %922 = vmatprep.subr.mxu0 0.0
        %923 = vmatpush1.msra.mxu0 %v896
        %924 = vmatprep.subr.mxu0 0.0
        %925 = vmatpush1.msra.mxu0 %v897
        %926 = vmatprep.subr.mxu0 0.0
        %927 = vmatpush1.msra.mxu0 %v898
        %928 = vmatprep.subr.mxu0 0.0
        %929 = vmatpush1.msra.mxu0 %v899
        %930 = vmatprep.subr.mxu0 0.0
        %931 = vmatpush1.msra.mxu0 %v900
        %932 = vmatprep.subr.mxu0 0.0
        %933 = vmatpush1.msra.mxu0 %v901
        %934 = vmatprep.subr.mxu0 0.0
        %935 = vmatpush1.msra.mxu0 %v902
        %936 = vmatprep.subr.mxu0 0.0
        %937 = vmatpush1.msra.mxu0 %v903
        %938 = vmatprep.subr.mxu0 0.0
        %939 = vmatpush1.msra.mxu0 %v904
        %940 = vmatprep.subr.mxu0 0.0
        %941 = vmatpush1.msra.mxu0 %v905
        %942 = vmatprep.subr.mxu0 0.0
        %943 = vmatpush1.msra.mxu0 %v906
        %944 = vmatprep.subr.mxu0 0.0
        %945 = vmatpush1.msra.mxu0 %v907
        %946 = vmatprep.subr.mxu0 0.0
        %947 = vmatpush1.msra.mxu0 %v908
        %948 = vmatprep.subr.mxu0 0.0
        %949 = vmatpush1.msra.mxu0 0.0
        %950 = vmatprep.subr.mxu0 0.0
        %951 = vmatpush1.msra.mxu0 0.0
        %952 = vmatprep.subr.mxu0 0.0
        %953 = vmatpush1.msra.mxu0 0.0
        %954 = vmatprep.subr.mxu0 0.0
        %955 = vmatpush1.msra.mxu0 0.0
        %956 = vmatprep.subr.mxu0 0.0
        %957 = vmatpush1.msra.mxu0 0.0
        %958 = vmatprep.subr.mxu0 0.0
        %959 = vmatpush1.msra.mxu0 0.0
        %960 = vmatprep.subr.mxu0 0.0
        %961 = vmatpush1.msra.mxu0 0.0
        %962 = vmatprep.subr.mxu0 0.0
        %963 = vmatpush1.msra.mxu0 0.0
        %964 = vmatprep.subr.mxu0 0.0
        %965 = vmatpush1.msra.mxu0 0.0
        %966 = vmatprep.subr.mxu0 0.0
        %967 = vmatpush1.msra.mxu0 0.0
        %968 = vmatprep.subr.mxu0 0.0
        %969 = vmatpush1.msra.mxu0 0.0
        %970 = vmatprep.subr.mxu0 0.0
        %971 = vmatpush1.msra.mxu0 0.0
        %972 = vmatprep.subr.mxu0 0.0
        %973 = vmatpush1.msra.mxu0 0.0
        %974 = vmatprep.subr.mxu0 0.0
        %975 = vmatpush1.msra.mxu0 0.0
        %976 = vmatprep.subr.mxu0 0.0
        %977 = vmatpush1.msra.mxu0 0.0
        %978 = vmatprep.subr.mxu0 0.0
        %979 = vmatpush1.msra.mxu0 0.0
        %980 = vmatprep.mubr.f32.mxu0 0.0
        %981 = vmatmul.mubr.f32.gmra.mrb[0].mxu0 %v892
        %v982 = vpop.f32.mrb[0].mxu0
        %v983 = vadd.f32 %v914, %v982
        %v984 = vpop.f32.mrb[0].mxu0
        %985 = vdwg.mxu0
        %v986 = vlaneseq
        %v987 = vand.u32 %v986, 127
        %s988 = sld [smem:[#allocation3 + %s39]]
        %v989 = vstv %s988
        %vm990 = vcmp.lt.s32.totalorder %v576, %v989
        %vm991 = vcmp.lt.s32.totalorder %v987, %v989
        %vm992 = vmand %vm990, %vm991
        %v993 = vsel %vm992, 1.0, 0.0
        %v994 = vmul.f32 %v983, %v983
        %995 = vadd.xlane.f32.xlu0 %v994
        %v996 = vpop.xlane.xlu0 %995
        %v997 = vmax.f32 %v996, 1e-16
        %v998 = vrsqrt.pop %v997
        %v999 = vmul.f32 %v983, %v998
        %1000 = vmatprep.subr.mxu0 0.0
        %1001 = vmatpush1.xpose.msra.mxu0 %v999
        %1002 = vmatprep.subr.mxu0 0.0
        %1003 = vmatpush1.xpose.msra.mxu0 0.0
        %1004 = vmatprep.subr.mxu0 0.0
        %1005 = vmatpush1.xpose.msra.mxu0 0.0
        %1006 = vmatprep.subr.mxu0 0.0
        %1007 = vmatpush1.xpose.msra.mxu0 0.0
        %1008 = vmatprep.subr.mxu0 0.0
        %1009 = vmatpush1.xpose.msra.mxu0 0.0
        %1010 = vmatprep.subr.mxu0 0.0
        %1011 = vmatpush1.xpose.msra.mxu0 0.0
        %1012 = vmatprep.subr.mxu0 0.0
        %1013 = vmatpush1.xpose.msra.mxu0 0.0
        %1014 = vmatprep.subr.mxu0 0.0
        %1015 = vmatpush1.xpose.msra.mxu0 0.0
        %1016 = vmatprep.subr.mxu0 0.0
        %1017 = vmatpush1.xpose.msra.mxu0 0.0
        %1018 = vmatprep.subr.mxu0 0.0
        %1019 = vmatpush1.xpose.msra.mxu0 0.0
        %1020 = vmatprep.subr.mxu0 0.0
        %1021 = vmatpush1.xpose.msra.mxu0 0.0
        %1022 = vmatprep.subr.mxu0 0.0
        %1023 = vmatpush1.xpose.msra.mxu0 0.0
        %1024 = vmatprep.subr.mxu0 0.0
        %1025 = vmatpush1.xpose.msra.mxu0 0.0
        %1026 = vmatprep.subr.mxu0 0.0
        %1027 = vmatpush1.xpose.msra.mxu0 0.0
        %1028 = vmatprep.subr.mxu0 0.0
        %1029 = vmatpush1.xpose.msra.mxu0 0.0
        %1030 = vmatprep.subr.mxu0 0.0
        %1031 = vmatpush1.xpose.msra.mxu0 0.0
        %1032 = vmatprep.subr.mxu0 0.0
        %1033 = vmatpush1.xpose.msra.mxu0 0.0
        %1034 = vmatprep.subr.mxu0 0.0
        %1035 = vmatpush1.xpose.msra.mxu0 0.0
        %1036 = vmatprep.subr.mxu0 0.0
        %1037 = vmatpush1.xpose.msra.mxu0 0.0
        %1038 = vmatprep.subr.mxu0 0.0
        %1039 = vmatpush1.xpose.msra.mxu0 0.0
        %1040 = vmatprep.subr.mxu0 0.0
        %1041 = vmatpush1.xpose.msra.mxu0 0.0
        %1042 = vmatprep.subr.mxu0 0.0
        %1043 = vmatpush1.xpose.msra.mxu0 0.0
        %1044 = vmatprep.subr.mxu0 0.0
        %1045 = vmatpush1.xpose.msra.mxu0 0.0
        %1046 = vmatprep.subr.mxu0 0.0
        %1047 = vmatpush1.xpose.msra.mxu0 0.0
        %1048 = vmatprep.subr.mxu0 0.0
        %1049 = vmatpush1.xpose.msra.mxu0 0.0
        %1050 = vmatprep.subr.mxu0 0.0
        %1051 = vmatpush1.xpose.msra.mxu0 0.0
        %1052 = vmatprep.subr.mxu0 0.0
        %1053 = vmatpush1.xpose.msra.mxu0 0.0
        %1054 = vmatprep.subr.mxu0 0.0
        %1055 = vmatpush1.xpose.msra.mxu0 0.0
        %1056 = vmatprep.subr.mxu0 0.0
        %1057 = vmatpush1.xpose.msra.mxu0 0.0
        %1058 = vmatprep.subr.mxu0 0.0
        %1059 = vmatpush1.xpose.msra.mxu0 0.0
        %1060 = vmatprep.subr.mxu0 0.0
        %1061 = vmatpush1.xpose.msra.mxu0 0.0
        %1062 = vmatprep.subr.mxu0 0.0
        %1063 = vmatpush1.xpose.msra.mxu0 0.0
        %1064 = vmatprep.mubr.f32.mxu0 0.0
        %1065 = vmatmul.mubr.f32.gmra.mrb[0].mxu0 %v999
        %v1066 = vpop.f32.mrb[0].mxu0
        %v1067 = vadd.f32 0.0, %v1066
        %v1068 = vpop.f32.mrb[0].mxu0
        %1069 = vdwg.mxu0
        %vm1070 = vcmp.gt.f32.partialorder %v1067, 0.7
        %v1071 = vsel %vm1070, %v1067, 0.0
        %vm1072 = vcmp.gt.f32.partialorder %v993, 0.0
        %v1073 = vsel %vm1072, %v1071, -1e+09
        %vm1074 = vcmask 64512
        %v1075 = vsel %vm1074, %v1073, -inf
        %1076 = vmax.xlane.f32.xlu0 %v1075
        %v1077 = vpop.xlane.xlu0 %1076
        %v1078 = vsub.f32 %v1073, %v1077
        %v1079 = vmul.f32 %v1078, 1.442695
        %v1080 = vpow.pop %v1079
        %v1081 = vsel %vm1074, %v1080, 0.0
        %1082 = vadd.xlane.f32.xlu0 %v1081
        %v1083 = vpop.xlane.xlu0 %1082
        %v1084 = vrcp.pop %v1083
        %v1085 = vmul.f32 %v1080, %v1084
        %v1086 = vld [vmem:[#allocation7] sm:$0xff]
        %v1087 = vsel %vm1072, %v1086, -1e+09
        %v1088 = vsel %vm1074, %v1087, -inf
        %1089 = vmax.xlane.f32.xlu0 %v1088
        %v1090 = vpop.xlane.xlu0 %1089
        %v1091 = vsub.f32 %v1087, %v1090
        %v1092 = vmul.f32 %v1091, 1.442695
        %v1093 = vpow.pop %v1092
        %v1094 = vsel %vm1074, %v1093, 0.0
        %1095 = vadd.xlane.f32.xlu0 %v1094
        %v1096 = vpop.xlane.xlu0 %1095
        %v1097 = vrcp.pop %v1096
        %v1098 = vmul.f32 %v1093, %v1097
        %v1099 = vld [vmem:[#allocation13] sm:$0xff]
        %v1100 = vld [vmem:[#allocation13 + $0x8] sm:$0xff]
        %v1101 = vld [vmem:[#allocation13 + $0x10] sm:$0xff]
        %v1102 = vld [vmem:[#allocation13 + $0x18] sm:$0xff]
        %v1103 = vld [vmem:[#allocation13 + $0x20] sm:$0xff]
        %v1104 = vld [vmem:[#allocation13 + $0x28] sm:$0xff]
        %v1105 = vld [vmem:[#allocation13 + $0x30] sm:$0xff]
        %v1106 = vld [vmem:[#allocation13 + $0x38] sm:$0xff]
        %v1107 = vld [vmem:[#allocation13 + $0x40] sm:$0xff]
        %v1108 = vld [vmem:[#allocation13 + $0x48] sm:$0xff]
        %v1109 = vld [vmem:[#allocation13 + $0x50] sm:$0xff]
        %v1110 = vld [vmem:[#allocation13 + $0x58] sm:$0xff]
        %v1111 = vld [vmem:[#allocation13 + $0x60] sm:$0xff]
        %v1112 = vld [vmem:[#allocation13 + $0x68] sm:$0xff]
        %v1113 = vld [vmem:[#allocation13 + $0x70] sm:$0xff]
        %v1114 = vld [vmem:[#allocation13 + $0x78] sm:$0xff]
        %v1115 = vld [vmem:[#allocation13 + $0x80] sm:$0xff]
        %v1116 = vld [vmem:[#allocation13 + $0x88] sm:$0xff]
        %v1117 = vld [vmem:[#allocation13 + $0x90] sm:$0xff]
        %v1118 = vld [vmem:[#allocation13 + $0x98] sm:$0xff]
        %v1119 = vld [vmem:[#allocation13 + $0xa0] sm:$0xff]
        %v1120 = vld [vmem:[#allocation13 + $0xa8] sm:$0xff]
        %v1121 = vld [vmem:[#allocation13 + $0xb0] sm:$0xff]
        %v1122 = vld [vmem:[#allocation13 + $0xb8] sm:$0xff]
        %v1123 = vld [vmem:[#allocation13 + $0xc0] sm:$0xff]
        %v1124 = vld [vmem:[#allocation13 + $0xc8] sm:$0xff]
        %v1125 = vld [vmem:[#allocation13 + $0xd0] sm:$0xff]
        %v1126 = vld [vmem:[#allocation13 + $0xd8] sm:$0xff]
        %v1127 = vld [vmem:[#allocation13 + $0xe0] sm:$0xff]
        %v1128 = vld [vmem:[#allocation13 + $0xe8] sm:$0xff]
        %v1129 = vld [vmem:[#allocation13 + $0xf0] sm:$0xff]
        %v1130 = vld [vmem:[#allocation13 + $0xf8] sm:$0xff]
        %1131 = vmatprep.subr.mxu0 %v1100
        %1132 = vmatpush1.msra.mxu0 %v1099
        %1133 = vmatprep.subr.mxu0 %v1102
        %1134 = vmatpush1.msra.mxu0 %v1101
        %1135 = vmatprep.subr.mxu0 %v1104
        %1136 = vmatpush1.msra.mxu0 %v1103
        %1137 = vmatprep.subr.mxu0 %v1106
        %1138 = vmatpush1.msra.mxu0 %v1105
        %1139 = vmatprep.subr.mxu0 %v1108
        %1140 = vmatpush1.msra.mxu0 %v1107
        %1141 = vmatprep.subr.mxu0 %v1110
        %1142 = vmatpush1.msra.mxu0 %v1109
        %1143 = vmatprep.subr.mxu0 %v1112
        %1144 = vmatpush1.msra.mxu0 %v1111
        %1145 = vmatprep.subr.mxu0 %v1114
        %1146 = vmatpush1.msra.mxu0 %v1113
        %1147 = vmatprep.subr.mxu0 %v1116
        %1148 = vmatpush1.msra.mxu0 %v1115
        %1149 = vmatprep.subr.mxu0 %v1118
        %1150 = vmatpush1.msra.mxu0 %v1117
        %1151 = vmatprep.subr.mxu0 %v1120
        %1152 = vmatpush1.msra.mxu0 %v1119
        %1153 = vmatprep.subr.mxu0 %v1122
        %1154 = vmatpush1.msra.mxu0 %v1121
        %1155 = vmatprep.subr.mxu0 %v1124
        %1156 = vmatpush1.msra.mxu0 %v1123
        %1157 = vmatprep.subr.mxu0 %v1126
        %1158 = vmatpush1.msra.mxu0 %v1125
        %1159 = vmatprep.subr.mxu0 %v1128
        %1160 = vmatpush1.msra.mxu0 %v1127
        %1161 = vmatprep.subr.mxu0 %v1130
        %1162 = vmatpush1.msra.mxu0 %v1129
        %1163 = vmatprep.subr.mxu0 0.0
        %1164 = vmatpush1.msra.mxu0 0.0
        %1165 = vmatprep.subr.mxu0 0.0
        %1166 = vmatpush1.msra.mxu0 0.0
        %1167 = vmatprep.subr.mxu0 0.0
        %1168 = vmatpush1.msra.mxu0 0.0
        %1169 = vmatprep.subr.mxu0 0.0
        %1170 = vmatpush1.msra.mxu0 0.0
        %1171 = vmatprep.subr.mxu0 0.0
        %1172 = vmatpush1.msra.mxu0 0.0
        %1173 = vmatprep.subr.mxu0 0.0
        %1174 = vmatpush1.msra.mxu0 0.0
        %1175 = vmatprep.subr.mxu0 0.0
        %1176 = vmatpush1.msra.mxu0 0.0
        %1177 = vmatprep.subr.mxu0 0.0
        %1178 = vmatpush1.msra.mxu0 0.0
        %1179 = vmatprep.subr.mxu0 0.0
        %1180 = vmatpush1.msra.mxu0 0.0
        %1181 = vmatprep.subr.mxu0 0.0
        %1182 = vmatpush1.msra.mxu0 0.0
        %1183 = vmatprep.subr.mxu0 0.0
        %1184 = vmatpush1.msra.mxu0 0.0
        %1185 = vmatprep.subr.mxu0 0.0
        %1186 = vmatpush1.msra.mxu0 0.0
        %1187 = vmatprep.subr.mxu0 0.0
        %1188 = vmatpush1.msra.mxu0 0.0
        %1189 = vmatprep.subr.mxu0 0.0
        %1190 = vmatpush1.msra.mxu0 0.0
        %1191 = vmatprep.subr.mxu0 0.0
        %1192 = vmatpush1.msra.mxu0 0.0
        %1193 = vmatprep.subr.mxu0 0.0
        %1194 = vmatpush1.msra.mxu0 0.0
        %1195 = vmatprep.mubr.f32.mxu0 0.0
        %1196 = vmatmul.mubr.f32.gmra.mrb[0].mxu0 %v983
        %v1197 = vpop.f32.mrb[0].mxu0
        %v1198 = vadd.f32 0.0, %v1197
        %v1199 = vpop.f32.mrb[0].mxu0
        %v1200 = vadd.f32 0.0, %v1199
        %1201 = vdwg.mxu0
        %1203 = vset.pattern.permute.xlu0 0
        %1204 = vperm.xlu0 %1203, %v1085
        %v1205 = vpop.permute.xlu0 %1204
        %v1207 = vlaneseq
        %v1208 = vshrl.u32 %v1207, 7
        %v1209 = vsub.s32 0, %v1208
        %v1210 = vrot.slane %v1198, %v1209
        %v1211 = vmul.f32 %v1205, %v1210
        %1212 = vset.pattern.permute.xlu0 1
        %1213 = vperm.xlu0 %1212, %v1085
        %v1214 = vpop.permute.xlu0 %1213
        %v1216 = vlaneseq
        %v1217 = vshrl.u32 %v1216, 7
        %v1218 = vsub.s32 1, %v1217
        %v1219 = vrot.slane %v1198, %v1218
        %v1220 = vmul.f32 %v1214, %v1219
        %v1221 = vadd.f32 %v1211, %v1220
        %1222 = vset.pattern.permute.xlu0 2
        %1223 = vperm.xlu0 %1222, %v1085
        %v1224 = vpop.permute.xlu0 %1223
        %v1226 = vlaneseq
        %v1227 = vshrl.u32 %v1226, 7
        %v1228 = vsub.s32 2, %v1227
        %v1229 = vrot.slane %v1198, %v1228
        %v1230 = vmul.f32 %v1224, %v1229
        %v1231 = vadd.f32 %v1221, %v1230
        %1232 = vset.pattern.permute.xlu0 3
        %1233 = vperm.xlu0 %1232, %v1085
        %v1234 = vpop.permute.xlu0 %1233
        %v1236 = vlaneseq
        %v1237 = vshrl.u32 %v1236, 7
        %v1238 = vsub.s32 3, %v1237
        %v1239 = vrot.slane %v1198, %v1238
        %v1240 = vmul.f32 %v1234, %v1239
        %v1241 = vadd.f32 %v1231, %v1240
        %1242 = vset.pattern.permute.xlu0 4
        %1243 = vperm.xlu0 %1242, %v1085
        %v1244 = vpop.permute.xlu0 %1243
        %v1246 = vlaneseq
        %v1247 = vshrl.u32 %v1246, 7
        %v1248 = vsub.s32 4, %v1247
        %v1249 = vrot.slane %v1198, %v1248
        %v1250 = vmul.f32 %v1244, %v1249
        %v1251 = vadd.f32 %v1241, %v1250
        %1252 = vset.pattern.permute.xlu0 5
        %1253 = vperm.xlu0 %1252, %v1085
        %v1254 = vpop.permute.xlu0 %1253
        %v1256 = vlaneseq
        %v1257 = vshrl.u32 %v1256, 7
        %v1258 = vsub.s32 5, %v1257
        %v1259 = vrot.slane %v1198, %v1258
        %v1260 = vmul.f32 %v1254, %v1259
        %v1261 = vadd.f32 %v1251, %v1260
        %1262 = vset.pattern.permute.xlu0 6
        %1263 = vperm.xlu0 %1262, %v1085
        %v1264 = vpop.permute.xlu0 %1263
        %v1266 = vlaneseq
        %v1267 = vshrl.u32 %v1266, 7
        %v1268 = vsub.s32 6, %v1267
        %v1269 = vrot.slane %v1198, %v1268
        %v1270 = vmul.f32 %v1264, %v1269
        %v1271 = vadd.f32 %v1261, %v1270
        %1272 = vset.pattern.permute.xlu0 7
        %1273 = vperm.xlu0 %1272, %v1085
        %v1274 = vpop.permute.xlu0 %1273
        %v1276 = vlaneseq
        %v1277 = vshrl.u32 %v1276, 7
        %v1278 = vsub.s32 7, %v1277
        %v1279 = vrot.slane %v1198, %v1278
        %v1280 = vmul.f32 %v1274, %v1279
        %v1281 = vadd.f32 %v1271, %v1280
        %v1282 = vadd.f32 %v1281, %v983
        %v1283 = vmul.f32 %v1282, 1.702
        %v1284 = vxor.u32 %v1283, 2147483648
        %v1285 = vmul.f32 %v1284, 1.442695
        %v1286 = vpow.pop %v1285
        %v1287 = vadd.f32 %v1286, 1.0
        %v1288 = vrcp.pop %v1287
        %v1289 = vmul.f32 1.0, %v1288
        %v1290 = vmul.f32 %v1282, %v1289
        %1292 = vset.pattern.permute.xlu0 0
        %1293 = vperm.xlu0 %1292, %v1098
        %v1294 = vpop.permute.xlu0 %1293
        %v1296 = vlaneseq
        %v1297 = vshrl.u32 %v1296, 7
        %v1298 = vsub.s32 0, %v1297
        %v1299 = vrot.slane %v1200, %v1298
        %v1300 = vmul.f32 %v1294, %v1299
        %1301 = vset.pattern.permute.xlu0 1
        %1302 = vperm.xlu0 %1301, %v1098
        %v1303 = vpop.permute.xlu0 %1302
        %v1305 = vlaneseq
        %v1306 = vshrl.u32 %v1305, 7
        %v1307 = vsub.s32 1, %v1306
        %v1308 = vrot.slane %v1200, %v1307
        %v1309 = vmul.f32 %v1303, %v1308
        %v1310 = vadd.f32 %v1300, %v1309
        %1311 = vset.pattern.permute.xlu0 2
        %1312 = vperm.xlu0 %1311, %v1098
        %v1313 = vpop.permute.xlu0 %1312
        %v1315 = vlaneseq
        %v1316 = vshrl.u32 %v1315, 7
        %v1317 = vsub.s32 2, %v1316
        %v1318 = vrot.slane %v1200, %v1317
        %v1319 = vmul.f32 %v1313, %v1318
        %v1320 = vadd.f32 %v1310, %v1319
        %1321 = vset.pattern.permute.xlu0 3
        %1322 = vperm.xlu0 %1321, %v1098
        %v1323 = vpop.permute.xlu0 %1322
        %v1325 = vlaneseq
        %v1326 = vshrl.u32 %v1325, 7
        %v1327 = vsub.s32 3, %v1326
        %v1328 = vrot.slane %v1200, %v1327
        %v1329 = vmul.f32 %v1323, %v1328
        %v1330 = vadd.f32 %v1320, %v1329
        %1331 = vset.pattern.permute.xlu0 4
        %1332 = vperm.xlu0 %1331, %v1098
        %v1333 = vpop.permute.xlu0 %1332
        %v1335 = vlaneseq
        %v1336 = vshrl.u32 %v1335, 7
        %v1337 = vsub.s32 4, %v1336
        %v1338 = vrot.slane %v1200, %v1337
        %v1339 = vmul.f32 %v1333, %v1338
        %v1340 = vadd.f32 %v1330, %v1339
        %1341 = vset.pattern.permute.xlu0 5
        %1342 = vperm.xlu0 %1341, %v1098
        %v1343 = vpop.permute.xlu0 %1342
        %v1345 = vlaneseq
        %v1346 = vshrl.u32 %v1345, 7
        %v1347 = vsub.s32 5, %v1346
        %v1348 = vrot.slane %v1200, %v1347
        %v1349 = vmul.f32 %v1343, %v1348
        %v1350 = vadd.f32 %v1340, %v1349
        %1351 = vset.pattern.permute.xlu0 6
        %1352 = vperm.xlu0 %1351, %v1098
        %v1353 = vpop.permute.xlu0 %1352
        %v1355 = vlaneseq
        %v1356 = vshrl.u32 %v1355, 7
        %v1357 = vsub.s32 6, %v1356
        %v1358 = vrot.slane %v1200, %v1357
        %v1359 = vmul.f32 %v1353, %v1358
        %v1360 = vadd.f32 %v1350, %v1359
        %1361 = vset.pattern.permute.xlu0 7
        %1362 = vperm.xlu0 %1361, %v1098
        %v1363 = vpop.permute.xlu0 %1362
        %v1365 = vlaneseq
        %v1366 = vshrl.u32 %v1365, 7
        %v1367 = vsub.s32 7, %v1366
        %v1368 = vrot.slane %v1200, %v1367
        %v1369 = vmul.f32 %v1363, %v1368
        %v1370 = vadd.f32 %v1360, %v1369
        %v1371 = vadd.f32 %v1370, %v983
        %v1372 = vmul.f32 %v1371, 1.702
        %v1373 = vxor.u32 %v1372, 2147483648
        %v1374 = vmul.f32 %v1373, 1.442695
        %v1375 = vpow.pop %v1374
        %v1376 = vadd.f32 %v1375, 1.0
        %v1377 = vrcp.pop %v1376
        %v1378 = vmul.f32 1.0, %v1377
        %v1379 = vmul.f32 %v1371, %v1378
        %v1380 = vld [vmem:[#allocation15] sm:$0xff]
        %v1381 = vld [vmem:[#allocation15 + $0x8] sm:$0xff]
        %v1382 = vld [vmem:[#allocation15 + $0x10] sm:$0xff]
        %v1383 = vld [vmem:[#allocation15 + $0x18] sm:$0xff]
        %v1384 = vld [vmem:[#allocation15 + $0x20] sm:$0xff]
        %v1385 = vld [vmem:[#allocation15 + $0x28] sm:$0xff]
        %v1386 = vld [vmem:[#allocation15 + $0x30] sm:$0xff]
        %v1387 = vld [vmem:[#allocation15 + $0x38] sm:$0xff]
        %v1388 = vld [vmem:[#allocation15 + $0x40] sm:$0xff]
        %v1389 = vld [vmem:[#allocation15 + $0x48] sm:$0xff]
        %v1390 = vld [vmem:[#allocation15 + $0x50] sm:$0xff]
        %v1391 = vld [vmem:[#allocation15 + $0x58] sm:$0xff]
        %v1392 = vld [vmem:[#allocation15 + $0x60] sm:$0xff]
        %v1393 = vld [vmem:[#allocation15 + $0x68] sm:$0xff]
        %v1394 = vld [vmem:[#allocation15 + $0x70] sm:$0xff]
        %v1395 = vld [vmem:[#allocation15 + $0x78] sm:$0xff]
        %1396 = vmatprep.subr.mxu0 0.0
        %1397 = vmatpush1.msra.mxu0 %v1380
        %1398 = vmatprep.subr.mxu0 0.0
        %1399 = vmatpush1.msra.mxu0 %v1381
        %1400 = vmatprep.subr.mxu0 0.0
        %1401 = vmatpush1.msra.mxu0 %v1382
        %1402 = vmatprep.subr.mxu0 0.0
        %1403 = vmatpush1.msra.mxu0 %v1383
        %1404 = vmatprep.subr.mxu0 0.0
        %1405 = vmatpush1.msra.mxu0 %v1384
        %1406 = vmatprep.subr.mxu0 0.0
        %1407 = vmatpush1.msra.mxu0 %v1385
        %1408 = vmatprep.subr.mxu0 0.0
        %1409 = vmatpush1.msra.mxu0 %v1386
        %1410 = vmatprep.subr.mxu0 0.0
        %1411 = vmatpush1.msra.mxu0 %v1387
        %1412 = vmatprep.subr.mxu0 0.0
        %1413 = vmatpush1.msra.mxu0 %v1388
        %1414 = vmatprep.subr.mxu0 0.0
        %1415 = vmatpush1.msra.mxu0 %v1389
        %1416 = vmatprep.subr.mxu0 0.0
        %1417 = vmatpush1.msra.mxu0 %v1390
        %1418 = vmatprep.subr.mxu0 0.0
        %1419 = vmatpush1.msra.mxu0 %v1391
        %1420 = vmatprep.subr.mxu0 0.0
        %1421 = vmatpush1.msra.mxu0 %v1392
        %1422 = vmatprep.subr.mxu0 0.0
        %1423 = vmatpush1.msra.mxu0 %v1393
        %1424 = vmatprep.subr.mxu0 0.0
        %1425 = vmatpush1.msra.mxu0 %v1394
        %1426 = vmatprep.subr.mxu0 0.0
        %1427 = vmatpush1.msra.mxu0 %v1395
        %1428 = vmatprep.subr.mxu0 0.0
        %1429 = vmatpush1.msra.mxu0 0.0
        %1430 = vmatprep.subr.mxu0 0.0
        %1431 = vmatpush1.msra.mxu0 0.0
        %1432 = vmatprep.subr.mxu0 0.0
        %1433 = vmatpush1.msra.mxu0 0.0
        %1434 = vmatprep.subr.mxu0 0.0
        %1435 = vmatpush1.msra.mxu0 0.0
        %1436 = vmatprep.subr.mxu0 0.0
        %1437 = vmatpush1.msra.mxu0 0.0
        %1438 = vmatprep.subr.mxu0 0.0
        %1439 = vmatpush1.msra.mxu0 0.0
        %1440 = vmatprep.subr.mxu0 0.0
        %1441 = vmatpush1.msra.mxu0 0.0
        %1442 = vmatprep.subr.mxu0 0.0
        %1443 = vmatpush1.msra.mxu0 0.0
        %1444 = vmatprep.subr.mxu0 0.0
        %1445 = vmatpush1.msra.mxu0 0.0
        %1446 = vmatprep.subr.mxu0 0.0
        %1447 = vmatpush1.msra.mxu0 0.0
        %1448 = vmatprep.subr.mxu0 0.0
        %1449 = vmatpush1.msra.mxu0 0.0
        %1450 = vmatprep.subr.mxu0 0.0
        %1451 = vmatpush1.msra.mxu0 0.0
        %1452 = vmatprep.subr.mxu0 0.0
        %1453 = vmatpush1.msra.mxu0 0.0
        %1454 = vmatprep.subr.mxu0 0.0
        %1455 = vmatpush1.msra.mxu0 0.0
        %1456 = vmatprep.subr.mxu0 0.0
        %1457 = vmatpush1.msra.mxu0 0.0
        %1458 = vmatprep.subr.mxu0 0.0
        %1459 = vmatpush1.msra.mxu0 0.0
        %1460 = vmatprep.mubr.f32.mxu0 0.0
        %1461 = vmatmul.mubr.f32.gmra.mrb[0].mxu0 %v1290
        %v1462 = vpop.f32.mrb[0].mxu0
        %v1463 = vadd.f32 0.0, %v1462
        %v1464 = vpop.f32.mrb[0].mxu0
        %1465 = vdwg.mxu0
        %v1466 = vlaneseq
        %v1467 = vshrl.u32 %v1466, 7
        %v1468 = vsub.s32 0, %v1467
        %v1469 = vrot.slane %v1463, %v1468
        %v1470 = vmul.f32 %v1205, %v1469
        %v1471 = vlaneseq
        %v1472 = vshrl.u32 %v1471, 7
        %v1473 = vsub.s32 1, %v1472
        %v1474 = vrot.slane %v1463, %v1473
        %v1475 = vmul.f32 %v1214, %v1474
        %v1476 = vadd.f32 %v1470, %v1475
        %v1477 = vlaneseq
        %v1478 = vshrl.u32 %v1477, 7
        %v1479 = vsub.s32 2, %v1478
        %v1480 = vrot.slane %v1463, %v1479
        %v1481 = vmul.f32 %v1224, %v1480
        %v1482 = vadd.f32 %v1476, %v1481
        %v1483 = vlaneseq
        %v1484 = vshrl.u32 %v1483, 7
        %v1485 = vsub.s32 3, %v1484
        %v1486 = vrot.slane %v1463, %v1485
        %v1487 = vmul.f32 %v1234, %v1486
        %v1488 = vadd.f32 %v1482, %v1487
        %v1489 = vlaneseq
        %v1490 = vshrl.u32 %v1489, 7
        %v1491 = vsub.s32 4, %v1490
        %v1492 = vrot.slane %v1463, %v1491
        %v1493 = vmul.f32 %v1244, %v1492
        %v1494 = vadd.f32 %v1488, %v1493
        %v1495 = vlaneseq
        %v1496 = vshrl.u32 %v1495, 7
        %v1497 = vsub.s32 5, %v1496
        %v1498 = vrot.slane %v1463, %v1497
        %v1499 = vmul.f32 %v1254, %v1498
        %v1500 = vadd.f32 %v1494, %v1499
        %v1501 = vlaneseq
        %v1502 = vshrl.u32 %v1501, 7
        %v1503 = vsub.s32 6, %v1502
        %v1504 = vrot.slane %v1463, %v1503
        %v1505 = vmul.f32 %v1264, %v1504
        %v1506 = vadd.f32 %v1500, %v1505
        %v1507 = vlaneseq
        %v1508 = vshrl.u32 %v1507, 7
        %v1509 = vsub.s32 7, %v1508
        %v1510 = vrot.slane %v1463, %v1509
        %v1511 = vmul.f32 %v1274, %v1510
        %v1512 = vadd.f32 %v1506, %v1511
        %v1513 = vadd.f32 %v1512, %v1290
        %v1514 = vmul.f32 %v1513, 1.702
        %v1515 = vxor.u32 %v1514, 2147483648
        %v1516 = vmul.f32 %v1515, 1.442695
        %v1517 = vpow.pop %v1516
        %v1518 = vadd.f32 %v1517, 1.0
        %v1519 = vrcp.pop %v1518
        %v1520 = vmul.f32 1.0, %v1519
        %v1521 = vmul.f32 %v1513, %v1520
        %v1522 = vld [vmem:[#allocation16] sm:$0xff]
        %v1523 = vld [vmem:[#allocation16 + $0x8] sm:$0xff]
        %v1524 = vld [vmem:[#allocation16 + $0x10] sm:$0xff]
        %v1525 = vld [vmem:[#allocation16 + $0x18] sm:$0xff]
        %v1526 = vld [vmem:[#allocation16 + $0x20] sm:$0xff]
        %v1527 = vld [vmem:[#allocation16 + $0x28] sm:$0xff]
        %v1528 = vld [vmem:[#allocation16 + $0x30] sm:$0xff]
        %v1529 = vld [vmem:[#allocation16 + $0x38] sm:$0xff]
        %v1530 = vld [vmem:[#allocation16 + $0x40] sm:$0xff]
        %v1531 = vld [vmem:[#allocation16 + $0x48] sm:$0xff]
        %v1532 = vld [vmem:[#allocation16 + $0x50] sm:$0xff]
        %v1533 = vld [vmem:[#allocation16 + $0x58] sm:$0xff]
        %v1534 = vld [vmem:[#allocation16 + $0x60] sm:$0xff]
        %v1535 = vld [vmem:[#allocation16 + $0x68] sm:$0xff]
        %v1536 = vld [vmem:[#allocation16 + $0x70] sm:$0xff]
        %v1537 = vld [vmem:[#allocation16 + $0x78] sm:$0xff]
        %1538 = vmatprep.subr.mxu0 0.0
        %1539 = vmatpush1.msra.mxu0 %v1522
        %1540 = vmatprep.subr.mxu0 0.0
        %1541 = vmatpush1.msra.mxu0 %v1523
        %1542 = vmatprep.subr.mxu0 0.0
        %1543 = vmatpush1.msra.mxu0 %v1524
        %1544 = vmatprep.subr.mxu0 0.0
        %1545 = vmatpush1.msra.mxu0 %v1525
        %1546 = vmatprep.subr.mxu0 0.0
        %1547 = vmatpush1.msra.mxu0 %v1526
        %1548 = vmatprep.subr.mxu0 0.0
        %1549 = vmatpush1.msra.mxu0 %v1527
        %1550 = vmatprep.subr.mxu0 0.0
        %1551 = vmatpush1.msra.mxu0 %v1528
        %1552 = vmatprep.subr.mxu0 0.0
        %1553 = vmatpush1.msra.mxu0 %v1529
        %1554 = vmatprep.subr.mxu0 0.0
        %1555 = vmatpush1.msra.mxu0 %v1530
        %1556 = vmatprep.subr.mxu0 0.0
        %1557 = vmatpush1.msra.mxu0 %v1531
        %1558 = vmatprep.subr.mxu0 0.0
        %1559 = vmatpush1.msra.mxu0 %v1532
        %1560 = vmatprep.subr.mxu0 0.0
        %1561 = vmatpush1.msra.mxu0 %v1533
        %1562 = vmatprep.subr.mxu0 0.0
        %1563 = vmatpush1.msra.mxu0 %v1534
        %1564 = vmatprep.subr.mxu0 0.0
        %1565 = vmatpush1.msra.mxu0 %v1535
        %1566 = vmatprep.subr.mxu0 0.0
        %1567 = vmatpush1.msra.mxu0 %v1536
        %1568 = vmatprep.subr.mxu0 0.0
        %1569 = vmatpush1.msra.mxu0 %v1537
        %1570 = vmatprep.subr.mxu0 0.0
        %1571 = vmatpush1.msra.mxu0 0.0
        %1572 = vmatprep.subr.mxu0 0.0
        %1573 = vmatpush1.msra.mxu0 0.0
        %1574 = vmatprep.subr.mxu0 0.0
        %1575 = vmatpush1.msra.mxu0 0.0
        %1576 = vmatprep.subr.mxu0 0.0
        %1577 = vmatpush1.msra.mxu0 0.0
        %1578 = vmatprep.subr.mxu0 0.0
        %1579 = vmatpush1.msra.mxu0 0.0
        %1580 = vmatprep.subr.mxu0 0.0
        %1581 = vmatpush1.msra.mxu0 0.0
        %1582 = vmatprep.subr.mxu0 0.0
        %1583 = vmatpush1.msra.mxu0 0.0
        %1584 = vmatprep.subr.mxu0 0.0
        %1585 = vmatpush1.msra.mxu0 0.0
        %1586 = vmatprep.subr.mxu0 0.0
        %1587 = vmatpush1.msra.mxu0 0.0
        %1588 = vmatprep.subr.mxu0 0.0
        %1589 = vmatpush1.msra.mxu0 0.0
        %1590 = vmatprep.subr.mxu0 0.0
        %1591 = vmatpush1.msra.mxu0 0.0
        %1592 = vmatprep.subr.mxu0 0.0
        %1593 = vmatpush1.msra.mxu0 0.0
        %1594 = vmatprep.subr.mxu0 0.0
        %1595 = vmatpush1.msra.mxu0 0.0
        %1596 = vmatprep.subr.mxu0 0.0
        %1597 = vmatpush1.msra.mxu0 0.0
        %1598 = vmatprep.subr.mxu0 0.0
        %1599 = vmatpush1.msra.mxu0 0.0
        %1600 = vmatprep.subr.mxu0 0.0
        %1601 = vmatpush1.msra.mxu0 0.0
        %1602 = vmatprep.mubr.f32.mxu0 0.0
        %1603 = vmatmul.mubr.f32.gmra.mrb[0].mxu0 %v1379
        %v1604 = vpop.f32.mrb[0].mxu0
        %v1605 = vadd.f32 0.0, %v1604
        %v1606 = vpop.f32.mrb[0].mxu0
        %1607 = vdwg.mxu0
        %v1608 = vlaneseq
        %v1609 = vshrl.u32 %v1608, 7
        %v1610 = vsub.s32 0, %v1609
        %v1611 = vrot.slane %v1605, %v1610
        %v1612 = vmul.f32 %v1294, %v1611
        %v1613 = vlaneseq
        %v1614 = vshrl.u32 %v1613, 7
        %v1615 = vsub.s32 1, %v1614
        %v1616 = vrot.slane %v1605, %v1615
        %v1617 = vmul.f32 %v1303, %v1616
        %v1618 = vadd.f32 %v1612, %v1617
        %v1619 = vlaneseq
        %v1620 = vshrl.u32 %v1619, 7
        %v1621 = vsub.s32 2, %v1620
        %v1622 = vrot.slane %v1605, %v1621
        %v1623 = vmul.f32 %v1313, %v1622
        %v1624 = vadd.f32 %v1618, %v1623
        %v1625 = vlaneseq
        %v1626 = vshrl.u32 %v1625, 7
        %v1627 = vsub.s32 3, %v1626
        %v1628 = vrot.slane %v1605, %v1627
        %v1629 = vmul.f32 %v1323, %v1628
        %v1630 = vadd.f32 %v1624, %v1629
        %v1631 = vlaneseq
        %v1632 = vshrl.u32 %v1631, 7
        %v1633 = vsub.s32 4, %v1632
        %v1634 = vrot.slane %v1605, %v1633
        %v1635 = vmul.f32 %v1333, %v1634
        %v1636 = vadd.f32 %v1630, %v1635
        %v1637 = vlaneseq
        %v1638 = vshrl.u32 %v1637, 7
        %v1639 = vsub.s32 5, %v1638
        %v1640 = vrot.slane %v1605, %v1639
        %v1641 = vmul.f32 %v1343, %v1640
        %v1642 = vadd.f32 %v1636, %v1641
        %v1643 = vlaneseq
        %v1644 = vshrl.u32 %v1643, 7
        %v1645 = vsub.s32 6, %v1644
        %v1646 = vrot.slane %v1605, %v1645
        %v1647 = vmul.f32 %v1353, %v1646
        %v1648 = vadd.f32 %v1642, %v1647
        %v1649 = vlaneseq
        %v1650 = vshrl.u32 %v1649, 7
        %v1651 = vsub.s32 7, %v1650
        %v1652 = vrot.slane %v1605, %v1651
        %v1653 = vmul.f32 %v1363, %v1652
        %v1654 = vadd.f32 %v1648, %v1653
        %v1655 = vadd.f32 %v1654, %v1379
        %v1656 = vmul.f32 %v1655, 1.702
        %v1657 = vxor.u32 %v1656, 2147483648
        %v1658 = vmul.f32 %v1657, 1.442695
        %v1659 = vpow.pop %v1658
        %v1660 = vadd.f32 %v1659, 1.0
        %v1661 = vrcp.pop %v1660
        %v1662 = vmul.f32 1.0, %v1661
        %v1663 = vmul.f32 %v1655, %v1662
        %v1664 = vld [vmem:[#allocation18] sm:$0xff]
        %v1665 = vld [vmem:[#allocation18 + $0x8] sm:$0xff]
        %v1666 = vld [vmem:[#allocation18 + $0x10] sm:$0xff]
        %v1667 = vld [vmem:[#allocation18 + $0x18] sm:$0xff]
        %v1668 = vld [vmem:[#allocation18 + $0x20] sm:$0xff]
        %v1669 = vld [vmem:[#allocation18 + $0x28] sm:$0xff]
        %v1670 = vld [vmem:[#allocation18 + $0x30] sm:$0xff]
        %v1671 = vld [vmem:[#allocation18 + $0x38] sm:$0xff]
        %v1672 = vld [vmem:[#allocation18 + $0x40] sm:$0xff]
        %v1673 = vld [vmem:[#allocation18 + $0x48] sm:$0xff]
        %v1674 = vld [vmem:[#allocation18 + $0x50] sm:$0xff]
        %v1675 = vld [vmem:[#allocation18 + $0x58] sm:$0xff]
        %v1676 = vld [vmem:[#allocation18 + $0x60] sm:$0xff]
        %v1677 = vld [vmem:[#allocation18 + $0x68] sm:$0xff]
        %v1678 = vld [vmem:[#allocation18 + $0x70] sm:$0xff]
        %v1679 = vld [vmem:[#allocation18 + $0x78] sm:$0xff]
        %v1680 = vld [vmem:[#allocation18 + $0x80] sm:$0xff]
        %v1681 = vld [vmem:[#allocation18 + $0x88] sm:$0xff]
        %v1682 = vld [vmem:[#allocation18 + $0x90] sm:$0xff]
        %v1683 = vld [vmem:[#allocation18 + $0x98] sm:$0xff]
        %v1684 = vld [vmem:[#allocation18 + $0xa0] sm:$0xff]
        %v1685 = vld [vmem:[#allocation18 + $0xa8] sm:$0xff]
        %v1686 = vld [vmem:[#allocation18 + $0xb0] sm:$0xff]
        %v1687 = vld [vmem:[#allocation18 + $0xb8] sm:$0xff]
        %v1688 = vld [vmem:[#allocation18 + $0xc0] sm:$0xff]
        %v1689 = vld [vmem:[#allocation18 + $0xc8] sm:$0xff]
        %v1690 = vld [vmem:[#allocation18 + $0xd0] sm:$0xff]
        %v1691 = vld [vmem:[#allocation18 + $0xd8] sm:$0xff]
        %v1692 = vld [vmem:[#allocation18 + $0xe0] sm:$0xff]
        %v1693 = vld [vmem:[#allocation18 + $0xe8] sm:$0xff]
        %v1694 = vld [vmem:[#allocation18 + $0xf0] sm:$0xff]
        %v1695 = vld [vmem:[#allocation18 + $0xf8] sm:$0xff]
        %v1696 = vld [vmem:[%s13] sm:$0x1]
        %v1698 = vlaneseq
        %v1699 = vshrl.u32 %v1698, 7
        %v1700 = vsub.s32 0, %v1699
        %v1701 = vrot.slane %v1696, %v1700
        %1703 = vmatprep.subr.mxu0 0.0
        %1704 = vmatpush1.msra.mxu0 %v1664
        %1705 = vmatprep.subr.mxu0 0.0
        %1706 = vmatpush1.msra.mxu0 %v1665
        %1707 = vmatprep.subr.mxu0 0.0
        %1708 = vmatpush1.msra.mxu0 %v1666
        %1709 = vmatprep.subr.mxu0 0.0
        %1710 = vmatpush1.msra.mxu0 %v1667
        %1711 = vmatprep.subr.mxu0 0.0
        %1712 = vmatpush1.msra.mxu0 %v1668
        %1713 = vmatprep.subr.mxu0 0.0
        %1714 = vmatpush1.msra.mxu0 %v1669
        %1715 = vmatprep.subr.mxu0 0.0
        %1716 = vmatpush1.msra.mxu0 %v1670
        %1717 = vmatprep.subr.mxu0 0.0
        %1718 = vmatpush1.msra.mxu0 %v1671
        %1719 = vmatprep.subr.mxu0 0.0
        %1720 = vmatpush1.msra.mxu0 %v1672
        %1721 = vmatprep.subr.mxu0 0.0
        %1722 = vmatpush1.msra.mxu0 %v1673
        %1723 = vmatprep.subr.mxu0 0.0
        %1724 = vmatpush1.msra.mxu0 %v1674
        %1725 = vmatprep.subr.mxu0 0.0
        %1726 = vmatpush1.msra.mxu0 %v1675
        %1727 = vmatprep.subr.mxu0 0.0
        %1728 = vmatpush1.msra.mxu0 %v1676
        %1729 = vmatprep.subr.mxu0 0.0
        %1730 = vmatpush1.msra.mxu0 %v1677
        %1731 = vmatprep.subr.mxu0 0.0
        %1732 = vmatpush1.msra.mxu0 %v1678
        %1733 = vmatprep.subr.mxu0 0.0
        %1734 = vmatpush1.msra.mxu0 %v1679
        %1735 = vmatprep.subr.mxu0 0.0
        %1736 = vmatpush1.msra.mxu0 %v1680
        %1737 = vmatprep.subr.mxu0 0.0
        %1738 = vmatpush1.msra.mxu0 %v1681
        %1739 = vmatprep.subr.mxu0 0.0
        %1740 = vmatpush1.msra.mxu0 %v1682
        %1741 = vmatprep.subr.mxu0 0.0
        %1742 = vmatpush1.msra.mxu0 %v1683
        %1743 = vmatprep.subr.mxu0 0.0
        %1744 = vmatpush1.msra.mxu0 %v1684
        %1745 = vmatprep.subr.mxu0 0.0
        %1746 = vmatpush1.msra.mxu0 %v1685
        %1747 = vmatprep.subr.mxu0 0.0
        %1748 = vmatpush1.msra.mxu0 %v1686
        %1749 = vmatprep.subr.mxu0 0.0
        %1750 = vmatpush1.msra.mxu0 %v1687
        %1751 = vmatprep.subr.mxu0 0.0
        %1752 = vmatpush1.msra.mxu0 %v1688
        %1753 = vmatprep.subr.mxu0 0.0
        %1754 = vmatpush1.msra.mxu0 %v1689
        %1755 = vmatprep.subr.mxu0 0.0
        %1756 = vmatpush1.msra.mxu0 %v1690
        %1757 = vmatprep.subr.mxu0 0.0
        %1758 = vmatpush1.msra.mxu0 %v1691
        %1759 = vmatprep.subr.mxu0 0.0
        %1760 = vmatpush1.msra.mxu0 %v1692
        %1761 = vmatprep.subr.mxu0 0.0
        %1762 = vmatpush1.msra.mxu0 %v1693
        %1763 = vmatprep.subr.mxu0 0.0
        %1764 = vmatpush1.msra.mxu0 %v1694
        %1765 = vmatprep.subr.mxu0 0.0
        %1766 = vmatpush1.msra.mxu0 %v1695
        %1767 = vmatprep.mubr.f32.mxu0 %v1663
        %1768 = vmatmul.mubr.f32.gmra.mrb[0].mxu0 %v1521
        %v1769 = vpop.f32.mrb[0].mxu0
        %v1770 = vadd.f32 %v1701, %v1769
        %v1771 = vpop.f32.mrb[0].mxu0
        %1772 = vdwg.mxu0
        %1773 = vst [vmem:[%s574] sm:$0xff] %v1770
        %s1774 = sand.u32 %s325, 1
        %s1775 = scalar_lea.sflag [#allocation6], %s1774
        %s1776 = sand.u32 %s325, 1
        %s1777 = smul.addr %s1776, 8
        %s1778 = scalar_lea.vmem [#allocation19], %s1777
        // Predicated region
        $region109: #{tpu_custom_call.1} parent=71 // pred_check
          %p1779 = pneg %p335
        $region110: #{tpu_custom_call.1} parent=71 // pred_check_branch
          %1781 = sbr.rel (%p1779) target = $region112
        $region111: #{tpu_custom_call.1} parent=71 // pred_region
          %s1783 = ssub.s32 128, 128
          %1784 = vsyncadd %s1775, %s1783
          %s1785 = smul.addr %s39, 128
          %s1786 = scalar_lea.hbm %s14, %s1785
          %s1788 = sshll.u32 %s1778, 4
          %s1789 = int_to_ptr.vmem [resolvable:$true] %s1788
          %1791 = dma.vmem_to_hbm [thread:$0]  %s1789, 128, %s1786, %s1775
        $region112: #{tpu_custom_call.1} parent=71 // pred_fallthru
          _
      $region72: #{tpu_custom_call.1} parent=5 // pred_fallthru
        _
      %p1792 = scmp.le.s32.totalorder 2, %s34
      // Predicated region
      $region113: #{tpu_custom_call.1} parent=5 // pred_check
        %p1793 = pneg %p1792
      $region114: #{tpu_custom_call.1} parent=5 // pred_check_branch
        %1795 = sbr.rel (%p1793) target = $region116
      $region115: #{tpu_custom_call.1} parent=5 // pred_region
        %s1796 = ssub.s32 %s34, 2
        // Predicated region
        $region117: #{tpu_custom_call.1} parent=115 // pred_check
          %p1797 = pneg %p341
        $region118: #{tpu_custom_call.1} parent=115 // pred_check_branch
          %1799 = sbr.rel (%p1797) target = $region120
        $region119: #{tpu_custom_call.1} parent=115 // pred_region
          %s1800 = sand.u32 %s326, 1
          %s1801 = scalar_lea.sflag [#allocation6], %s1800
          %s1802 = sand.u32 %s326, 1
          %s1803 = smul.addr %s1802, 8
          %s1804 = scalar_lea.vmem [#allocation19], %s1803
          %1805 = dma.done %s1801, 128
        $region120: #{tpu_custom_call.1} parent=115 // pred_fallthru
          _
      $region116: #{tpu_custom_call.1} parent=5 // pred_fallthru
        _
    $region6: #{tpu_custom_call.1} parent=1 // loop_footer
      %s38 = sadd.s32 1, %s34
    $region7: #{tpu_custom_call.1} parent=1 // loop_footer_branch
      %33 = sbr.rel target = $region3
    $region8: #{tpu_custom_call.1} parent=1 // loop_exit
      _
    %1806 = vsyncpa [#allocation5], 1
    %s1807 = scalar_lea.sflag [#allocation5], 1
    %1808 = vsyncpa %s1807, 1
    %1809 = vsyncpa [#allocation8], 1
    %1810 = vsyncpa [#allocation11], 1
    %1811 = vsyncpa [#allocation14], 1
    %1812 = vsyncpa [#allocation17], 1
    %1813 = vsyncpa [#allocation6], 1
    %s1814 = scalar_lea.sflag [#allocation6], 1
    %1815 = vsyncpa %s1814, 1

</llo_original>
